<compile_context>
chip_gen: v7x
topology: tpu7x:2x2x1
jax: 0.10.0
libtpu: 0.0.40
codegen_flags: <defaults>
</compile_context>

<pallas_src>
import jax
import jax.numpy as jnp
from jax.experimental import pallas as pl
from jax.experimental.pallas import tpu as pltpu

IN_FEATURES = 28 * 28      # 784
HIDDEN = 512
OUT_FEATURES = 10
OUT_PAD = 128              # lane-dense fc2 output width


def _round_up(x, m):
    return (x + m - 1) // m * m


def _tile_m(batch):
    """Batch tile.

    B <= 1024: a single tile (rounded to a sublane multiple of 8) — one DMA,
    one MXU pass, no per-step pipeline overhead, negligible pad waste.
    B  > 1024: largest tile in {1024, 512, 256, 128} with <= 12.5% pad waste.
    """
    if batch <= 1024:
        return _round_up(batch, 8)
    for tm in (1024, 512, 256, 128):
        if (_round_up(batch, tm) - batch) * 8 <= batch:
            return tm
    return 128


def prepare_params(w1, b1, w2, b2, compute_dtype=jnp.float32):
    """One-time weight prep (pad + cast). Call once; reuse for every forward.

    w1: (784, 512), b1: (512,), w2: (512, 10), b2: (10,) — already stored as
    (in, out), i.e. the transpose of PyTorch's (out, in) layout.
    """
    w1c = w1.astype(compute_dtype)                                        # (784, 512)
    b1c = b1.reshape(1, HIDDEN).astype(jnp.float32)                       # (1, 512)
    w2c = jnp.pad(w2, ((0, 0), (0, OUT_PAD - OUT_FEATURES))).astype(compute_dtype)  # (512, 128)
    b2c = jnp.pad(b2, ((0, OUT_PAD - OUT_FEATURES),)).reshape(1, OUT_PAD).astype(jnp.float32)
    return w1c, b1c, w2c, b2c


def mlp_kernel(x_ref, w1_ref, b1_ref, w2_ref, b2_ref, o_ref):
    # In-kernel cast of x to the weight dtype (no-op for f32 weights; for bf16
    # weights this avoids ever writing a bf16 copy of x to HBM).
    x = x_ref[...].astype(w1_ref.dtype)
    # fc1 on the MXU with f32 accumulation; bias + ReLU stay in f32 (correct
    # on v5e's VPU too, which has no bf16 elementwise).
    h = jnp.dot(x, w1_ref[...], preferred_element_type=jnp.float32)
    h = jnp.maximum(h + b1_ref[...], 0.0)
    # fc2: output padded to 128 lanes -> unmasked stores.
    out = jnp.dot(h.astype(w2_ref.dtype), w2_ref[...],
                  preferred_element_type=jnp.float32)
    o_ref[...] = (out + b2_ref[...]).astype(o_ref.dtype)


@jax.jit
def net_forward(x_nchw, w1c, b1c, w2c, b2c):
    """x_nchw: (B, 1, 28, 28) float32. Returns (B, 10) float32."""
    B = x_nchw.shape[0]
    x = x_nchw.reshape(B, IN_FEATURES)          # == input_data.view(-1, 28*28), stays f32

    TM = _tile_m(B)
    B_pad = _round_up(B, TM)
    if B_pad != B:
        x = jnp.pad(x, ((0, B_pad - B), (0, 0)))   # batch pad only; rows sliced off
    grid = (B_pad // TM,)

    w_itemsize = jnp.dtype(w1c.dtype).itemsize
    cost = pl.CostEstimate(
        flops=2 * B_pad * (IN_FEATURES * HIDDEN + HIDDEN * OUT_PAD),
        transcendentals=0,
        bytes_accessed=(B_pad * IN_FEATURES * 4                 # x (f32, streamed once)
                        + IN_FEATURES * HIDDEN * w_itemsize     # W1
                        + HIDDEN * OUT_PAD * w_itemsize         # W2
                        + (HIDDEN + OUT_PAD) * 4                # biases (f32)
                        + B_pad * OUT_PAD * 4))                 # out (f32)

    out_padded = pl.pallas_call(
        mlp_kernel,
        out_shape=jax.ShapeDtypeStruct((B_pad, OUT_PAD), jnp.float32),
        grid_spec=pltpu.PrefetchScalarGridSpec(
            num_scalar_prefetch=0,
            grid=grid,
            in_specs=[
                # x tile: full-extent last dim (784) — no K padding needed.
                pl.BlockSpec((TM, IN_FEATURES), lambda i: (i, 0)),
                # Weights/biases: constant index_map -> resident across tiles.
                pl.BlockSpec((IN_FEATURES, HIDDEN), lambda i: (0, 0)),
                pl.BlockSpec((1, HIDDEN), lambda i: (0, 0)),
                pl.BlockSpec((HIDDEN, OUT_PAD), lambda i: (0, 0)),
                pl.BlockSpec((1, OUT_PAD), lambda i: (0, 0)),
            ],
            out_specs=pl.BlockSpec((TM, OUT_PAD), lambda i: (i, 0)),
        ),
        compiler_params=pltpu.CompilerParams(
            dimension_semantics=("parallel",),
            vmem_limit_bytes=32 << 20,   # explicit: covers v5e's 16 MiB default, safe on v7x
        ),
        cost_estimate=cost,
    )(x, w1c, b1c, w2c, b2c)

    return out_padded[:B, :OUT_FEATURES]


def init_params(key):
    """Deterministic init mimicking nn.Linear's uniform(-1/sqrt(fan_in), +...)."""
    k1, k2, k3, k4 = jax.random.split(key, 4)
    bound1 = 1.0 / jnp.sqrt(IN_FEATURES)
    bound2 = 1.0 / jnp.sqrt(HIDDEN)
    # Stored directly as (in, out) — transpose of PyTorch's (out, in) layout.
    w1 = jax.random.uniform(k1, (IN_FEATURES, HIDDEN), jnp.float32, -bound1, bound1)
    b1 = jax.random.uniform(k2, (HIDDEN,), jnp.float32, -bound1, bound1)
    w2 = jax.random.uniform(k3, (HIDDEN, OUT_FEATURES), jnp.float32, -bound2, bound2)
    b2 = jax.random.uniform(k4, (OUT_FEATURES,), jnp.float32, -bound2, bound2)
    return w1, b1, w2, b2


if __name__ == "__main__":
    key = jax.random.PRNGKey(0)
    k_params, k_x = jax.random.split(key)
    w1, b1, w2, b2 = init_params(k_params)

    B = 8
    x = jax.random.normal(k_x, (B, 1, 28, 28), dtype=jnp.float32)  # NCHW, as in MNIST

    # f32 weights — matches the PyTorch module's forward semantics.
    params_f32 = prepare_params(w1, b1, w2, b2, compute_dtype=jnp.float32)
    out = jax.block_until_ready(net_forward(x, *params_f32))

    ref = jnp.maximum(x.reshape(B, -1) @ w1 + b1, 0.0) @ w2 + b2
    assert out.shape == (B, OUT_FEATURES)
    assert jnp.allclose(out, ref, atol=1e-4, rtol=1e-4)

    # bf16-weight path (one-time init cast; x streams in f32 and is cast
    # in-kernel). Halves weight HBM traffic — main lever on v5e/v6e small batch.
    params_bf16 = prepare_params(w1, b1, w2, b2, compute_dtype=jnp.bfloat16)
    out_bf16 = jax.block_until_ready(net_forward(x, *params_bf16))
    assert out_bf16.shape == (B, OUT_FEATURES)
    assert jnp.allclose(out_bf16, ref, atol=1e-1, rtol=1e-1)

    print("KERNEL_OK")
</pallas_src>

<mosaic_0001>
module attributes {stable_mosaic.version = 11 : i64} {
  func.func @mlp_kernel(%arg0: i32, %arg1: memref<8x784xf32, #tpu.memory_space<vmem>>, %arg2: memref<784x512xf32, #tpu.memory_space<vmem>>, %arg3: memref<1x512xf32, #tpu.memory_space<vmem>>, %arg4: memref<512x128xf32, #tpu.memory_space<vmem>>, %arg5: memref<1x128xf32, #tpu.memory_space<vmem>>, %arg6: memref<8x128xf32, #tpu.memory_space<vmem>>) attributes {dimension_semantics = [#tpu.dimension_semantics<parallel>], iteration_bounds = array<i64: 1>, scalar_prefetch = 0 : i64, scratch_operands = 0 : i64, tpu.core_type = #tpu.core_type<tc>, window_params = [{transform_indices = @transform_0, window_bounds = array<i64: 8, 784>}, {pipeline_mode = #tpu.pipeline_mode<synchronous>, transform_indices = @transform_1, window_bounds = array<i64: 784, 512>}, {pipeline_mode = #tpu.pipeline_mode<synchronous>, transform_indices = @transform_2, window_bounds = array<i64: 1, 512>}, {pipeline_mode = #tpu.pipeline_mode<synchronous>, transform_indices = @transform_3, window_bounds = array<i64: 512, 128>}, {pipeline_mode = #tpu.pipeline_mode<synchronous>, transform_indices = @transform_4, window_bounds = array<i64: 1, 128>}, {transform_indices = @transform_5, window_bounds = array<i64: 8, 128>}]} {
    %c0 = arith.constant 0 : index
    %c0_0 = arith.constant 0 : index
    %0 = vector.load %arg1[%c0, %c0_0] : memref<8x784xf32, #tpu.memory_space<vmem>>, vector<8x784xf32>
    %c0_1 = arith.constant 0 : index
    %c0_2 = arith.constant 0 : index
    %1 = vector.load %arg2[%c0_1, %c0_2] : memref<784x512xf32, #tpu.memory_space<vmem>>, vector<784x512xf32>
    %cst = arith.constant dense<0.000000e+00> : vector<8x512xf32>
    %2 = tpu.matmul %0, %1, %cst {dimension_numbers = #tpu.dot_dimension_numbers<[1], [0], [0], [1], [0, 0, 1, 1], [], []>} : vector<8x784xf32>, vector<784x512xf32>, vector<8x512xf32> -> vector<8x512xf32>
    %c0_3 = arith.constant 0 : index
    %c0_4 = arith.constant 0 : index
    %3 = vector.load %arg3[%c0_3, %c0_4] : memref<1x512xf32, #tpu.memory_space<vmem>>, vector<1x512xf32>
    %4 = vector.broadcast %3 : vector<1x512xf32> to vector<8x512xf32>
    %5 = arith.addf %2, %4 : vector<8x512xf32>
    %cst_5 = arith.constant 0.000000e+00 : f32
    %6 = vector.broadcast %cst_5 : f32 to vector<8x512xf32>
    %7 = arith.maximumf %5, %6 : vector<8x512xf32>
    %c0_6 = arith.constant 0 : index
    %c0_7 = arith.constant 0 : index
    %8 = vector.load %arg4[%c0_6, %c0_7] : memref<512x128xf32, #tpu.memory_space<vmem>>, vector<512x128xf32>
    %cst_8 = arith.constant dense<0.000000e+00> : vector<8x128xf32>
    %9 = tpu.matmul %7, %8, %cst_8 {dimension_numbers = #tpu.dot_dimension_numbers<[1], [0], [0], [1], [0, 0, 1, 1], [], []>} : vector<8x512xf32>, vector<512x128xf32>, vector<8x128xf32> -> vector<8x128xf32>
    %c0_9 = arith.constant 0 : index
    %c0_10 = arith.constant 0 : index
    %10 = vector.load %arg5[%c0_9, %c0_10] : memref<1x128xf32, #tpu.memory_space<vmem>>, vector<1x128xf32>
    %11 = vector.broadcast %10 : vector<1x128xf32> to vector<8x128xf32>
    %12 = arith.addf %9, %11 : vector<8x128xf32>
    %c0_11 = arith.constant 0 : index
    %c0_12 = arith.constant 0 : index
    %13 = vector.load %arg6[%c0_11, %c0_12] : memref<8x128xf32, #tpu.memory_space<vmem>>, vector<8x128xf32>
    tpu.vector_store %arg6[%c0_11, %c0_12], %12 {strides = array<i32>} : memref<8x128xf32, #tpu.memory_space<vmem>>, vector<8x128xf32>,
    return
  }
  func.func @transform_0(%arg0: i32) -> (i32, i32) {
    %c0_i32 = arith.constant 0 : i32
    %c0_i32_0 = arith.constant 0 : i32
    return %arg0, %c0_i32 : i32, i32
  }
  func.func @transform_1(%arg0: i32) -> (i32, i32) {
    %c0_i32 = arith.constant 0 : i32
    %c0_i32_0 = arith.constant 0 : i32
    %c0_i32_1 = arith.constant 0 : i32
    return %c0_i32, %c0_i32_0 : i32, i32
  }
  func.func @transform_2(%arg0: i32) -> (i32, i32) {
    %c0_i32 = arith.constant 0 : i32
    %c0_i32_0 = arith.constant 0 : i32
    %c0_i32_1 = arith.constant 0 : i32
    return %c0_i32, %c0_i32_0 : i32, i32
  }
  func.func @transform_3(%arg0: i32) -> (i32, i32) {
    %c0_i32 = arith.constant 0 : i32
    %c0_i32_0 = arith.constant 0 : i32
    %c0_i32_1 = arith.constant 0 : i32
    return %c0_i32, %c0_i32_0 : i32, i32
  }
  func.func @transform_4(%arg0: i32) -> (i32, i32) {
    %c0_i32 = arith.constant 0 : i32
    %c0_i32_0 = arith.constant 0 : i32
    %c0_i32_1 = arith.constant 0 : i32
    return %c0_i32, %c0_i32_0 : i32, i32
  }
  func.func @transform_5(%arg0: i32) -> (i32, i32) {
    %c0_i32 = arith.constant 0 : i32
    %c0_i32_0 = arith.constant 0 : i32
    return %arg0, %c0_i32 : i32, i32
  }
}

</mosaic_0001>

<llo_original>
// kernel: net_forward.1
$region0: #{net_forward.1}
  #allocation0 [shape = 'u32[]', space=smem, size = 0x4, offset = 0x4, fixed_abs, tag = 'smem constant byte address 0x4 - core index']
  #allocation1 [shape = 'u32[144,128]{1,0:T(1,128)}', space=vmem, size = 0x12000, scoped, tag = 'internal scratch']
  %s0 = inlined_call_operand.vmem [shape: f32[8,784], index: 0, kind: input, shape index: {}]
  %s1 = inlined_call_operand.hbm [shape: f32[784,512], index: 1, kind: input, shape index: {}]
  %s2 = inlined_call_operand.hbm [shape: f32[1,512], index: 2, kind: input, shape index: {}]
  %s3 = inlined_call_operand.hbm [shape: f32[512,128], index: 3, kind: input, shape index: {}]
  %s4 = inlined_call_operand.hbm [shape: f32[1,128], index: 4, kind: input, shape index: {}]
  %s5 = inlined_call_operand.hbm [shape: f32[8,128], index: 5, kind: output, shape index: {}]
  %s6 = sld [smem:[#allocation0]]
  $region46: #{net_forward.1} parent=0
    _
  %s8 = ssub.s32 1, %s6
  %s9 = scalar_select 0, %s8, %s6
  $region1: #{net_forward.1} parent=0
    #allocation2 [shape = 'u8[1605632]{0}', space=vmem, size = 0x188000, scoped, tag = 'input window, operand 1, single buffered']
    #allocation3 [shape = 's32[1]{0}', space=sflag, size = 0x4, scoped, tag = 'scoped memory for net_forward.1']
    #allocation4 [shape = 's32[1]{0}', space=sflag, size = 0x4, scoped, tag = 'scoped memory for net_forward.1']
    #allocation5 [shape = 'u8[2048]{0}', space=vmem, size = 0x800, scoped, tag = 'input window, operand 2, single buffered']
    #allocation6 [shape = 's32[1]{0}', space=sflag, size = 0x4, scoped, tag = 'scoped memory for net_forward.1']
    #allocation7 [shape = 'u8[262144]{0}', space=vmem, size = 0x40000, scoped, tag = 'input window, operand 3, single buffered']
    #allocation8 [shape = 'u8[512]{0}', space=vmem, size = 0x400, scoped, tag = 'input window, operand 4, single buffered']
    #allocation9 [shape = 's32[1]{0}', space=sflag, size = 0x4, scoped, tag = 'scoped memory for net_forward.1']
    #allocation10 [shape = 'u8[4096]{0}', space=vmem, size = 0x1000, scoped, tag = 'output window, operand 0, single buffered']
    %10 = vsyncpa [#allocation3], 0
    %11 = vsyncpa [#allocation6], 0
    %12 = vsyncpa [#allocation9], 0
    %13 = vsyncpa [#allocation4], 0
    // Predicated region
    $region2: #{net_forward.1} parent=1 // pred_check
      _
    $region3: #{net_forward.1} parent=1 // pred_check_branch
      %15 = sbr.rel (0) target = $region5
    $region4: #{net_forward.1} parent=1 // pred_region
      _
    $region5: #{net_forward.1} parent=1 // pred_fallthru
      _
    // Predicated region
    $region6: #{net_forward.1} parent=1 // pred_check
      _
    $region7: #{net_forward.1} parent=1 // pred_check_branch
      %17 = sbr.rel (0) target = $region9
    $region8: #{net_forward.1} parent=1 // pred_region
      %s19 = ssub.s32 50176, 50176
      %20 = vsyncadd [#allocation3], %s19
      %s21 = sshll.u32 [#allocation2], 4
      %s22 = int_to_ptr.vmem [resolvable:$true] %s21
      %27 = dma.hbm_to_vmem [thread:$0]  %s1, 50176, %s22, [#allocation3], 512, 512, 32
    $region9: #{net_forward.1} parent=1 // pred_fallthru
      _
    // Predicated region
    $region10: #{net_forward.1} parent=1 // pred_check
      _
    $region11: #{net_forward.1} parent=1 // pred_check_branch
      %29 = sbr.rel (0) target = $region13
    $region12: #{net_forward.1} parent=1 // pred_region
      %s31 = ssub.s32 64, 64
      %32 = vsyncadd [#allocation6], %s31
      %s34 = sshll.u32 [#allocation5], 4
      %s35 = int_to_ptr.vmem [resolvable:$true] %s34
      %37 = dma.hbm_to_vmem [thread:$0]  %s2, 64, %s35, [#allocation6]
    $region13: #{net_forward.1} parent=1 // pred_fallthru
      _
    // Predicated region
    $region14: #{net_forward.1} parent=1 // pred_check
      _
    $region15: #{net_forward.1} parent=1 // pred_check_branch
      %39 = sbr.rel (0) target = $region17
    $region16: #{net_forward.1} parent=1 // pred_region
      %s41 = ssub.s32 8192, 8192
      %42 = vsyncadd [#allocation6], %s41
      %s43 = sshll.u32 [#allocation7], 4
      %s44 = int_to_ptr.vmem [resolvable:$true] %s43
      %49 = dma.hbm_to_vmem [thread:$0]  %s3, 8192, %s44, [#allocation6], 128, 128, 8
    $region17: #{net_forward.1} parent=1 // pred_fallthru
      _
    // Predicated region
    $region18: #{net_forward.1} parent=1 // pred_check
      _
    $region19: #{net_forward.1} parent=1 // pred_check_branch
      %51 = sbr.rel (0) target = $region21
    $region20: #{net_forward.1} parent=1 // pred_region
      %s53 = ssub.s32 16, 16
      %54 = vsyncadd [#allocation9], %s53
      %s56 = sshll.u32 [#allocation8], 4
      %s57 = int_to_ptr.vmem [resolvable:$true] %s56
      %59 = dma.hbm_to_vmem [thread:$0]  %s4, 16, %s57, [#allocation9]
    $region21: #{net_forward.1} parent=1 // pred_fallthru
      _
    // Predicated region
    $region22: #{net_forward.1} parent=1 // pred_check
      _
    $region23: #{net_forward.1} parent=1 // pred_check_branch
      %61 = sbr.rel (0) target = $region25
    $region24: #{net_forward.1} parent=1 // pred_region
      %62 = dma.done [#allocation3], 50176
    $region25: #{net_forward.1} parent=1 // pred_fallthru
      _
    // Predicated region
    $region26: #{net_forward.1} parent=1 // pred_check
      _
    $region27: #{net_forward.1} parent=1 // pred_check_branch
      %64 = sbr.rel (0) target = $region29
    $region28: #{net_forward.1} parent=1 // pred_region
      %65 = dma.done [#allocation6], 64
    $region29: #{net_forward.1} parent=1 // pred_fallthru
      _
    // Predicated region
    $region30: #{net_forward.1} parent=1 // pred_check
      _
    $region31: #{net_forward.1} parent=1 // pred_check_branch
      %67 = sbr.rel (0) target = $region33
    $region32: #{net_forward.1} parent=1 // pred_region
      %68 = dma.done [#allocation6], 8192
    $region33: #{net_forward.1} parent=1 // pred_fallthru
      _
    // Predicated region
    $region34: #{net_forward.1} parent=1 // pred_check
      _
    $region35: #{net_forward.1} parent=1 // pred_check_branch
      %70 = sbr.rel (0) target = $region37
    $region36: #{net_forward.1} parent=1 // pred_region
      %71 = dma.done [#allocation9], 16
    $region37: #{net_forward.1} parent=1 // pred_fallthru
      _
    %v72 = vld [vmem:[%s0] sm:$0xff]
    %v73 = vld [vmem:[%s0 + $0x8] sm:$0xff]
    %v74 = vld [vmem:[%s0 + $0x10] sm:$0xff]
    %v75 = vld [vmem:[%s0 + $0x18] sm:$0xff]
    %v76 = vld [vmem:[%s0 + $0x20] sm:$0xff]
    %v77 = vld [vmem:[%s0 + $0x28] sm:$0xff]
    %v78 = vld [vmem:[%s0 + $0x30] sm:$0xff]
    %v79 = vld [vmem:[#allocation2] sm:$0xff]
    %v80 = vld [vmem:[#allocation2 + $0x8] sm:$0xff]
    %v81 = vld [vmem:[#allocation2 + $0x10] sm:$0xff]
    %v82 = vld [vmem:[#allocation2 + $0x18] sm:$0xff]
    %v83 = vld [vmem:[#allocation2 + $0x20] sm:$0xff]
    %v84 = vld [vmem:[#allocation2 + $0x28] sm:$0xff]
    %v85 = vld [vmem:[#allocation2 + $0x30] sm:$0xff]
    %v86 = vld [vmem:[#allocation2 + $0x38] sm:$0xff]
    %v87 = vld [vmem:[#allocation2 + $0x40] sm:$0xff]
    %v88 = vld [vmem:[#allocation2 + $0x48] sm:$0xff]
    %v89 = vld [vmem:[#allocation2 + $0x50] sm:$0xff]
    %v90 = vld [vmem:[#allocation2 + $0x58] sm:$0xff]
    %v91 = vld [vmem:[#allocation2 + $0x60] sm:$0xff]
    %v92 = vld [vmem:[#allocation2 + $0x68] sm:$0xff]
    %v93 = vld [vmem:[#allocation2 + $0x70] sm:$0xff]
    %v94 = vld [vmem:[#allocation2 + $0x78] sm:$0xff]
    %v95 = vld [vmem:[#allocation2 + $0x80] sm:$0xff]
    %v96 = vld [vmem:[#allocation2 + $0x88] sm:$0xff]
    %v97 = vld [vmem:[#allocation2 + $0x90] sm:$0xff]
    %v98 = vld [vmem:[#allocation2 + $0x98] sm:$0xff]
    %v99 = vld [vmem:[#allocation2 + $0xa0] sm:$0xff]
    %v100 = vld [vmem:[#allocation2 + $0xa8] sm:$0xff]
    %v101 = vld [vmem:[#allocation2 + $0xb0] sm:$0xff]
    %v102 = vld [vmem:[#allocation2 + $0xb8] sm:$0xff]
    %v103 = vld [vmem:[#allocation2 + $0xc0] sm:$0xff]
    %v104 = vld [vmem:[#allocation2 + $0xc8] sm:$0xff]
    %v105 = vld [vmem:[#allocation2 + $0xd0] sm:$0xff]
    %v106 = vld [vmem:[#allocation2 + $0xd8] sm:$0xff]
    %v107 = vld [vmem:[#allocation2 + $0xe0] sm:$0xff]
    %v108 = vld [vmem:[#allocation2 + $0xe8] sm:$0xff]
    %v109 = vld [vmem:[#allocation2 + $0xf0] sm:$0xff]
    %v110 = vld [vmem:[#allocation2 + $0xf8] sm:$0xff]
    %v111 = vld [vmem:[#allocation2 + $0x100] sm:$0xff]
    %v112 = vld [vmem:[#allocation2 + $0x108] sm:$0xff]
    %v113 = vld [vmem:[#allocation2 + $0x110] sm:$0xff]
    %v114 = vld [vmem:[#allocation2 + $0x118] sm:$0xff]
    %v115 = vld [vmem:[#allocation2 + $0x120] sm:$0xff]
    %v116 = vld [vmem:[#allocation2 + $0x128] sm:$0xff]
    %v117 = vld [vmem:[#allocation2 + $0x130] sm:$0xff]
    %v118 = vld [vmem:[#allocation2 + $0x138] sm:$0xff]
    %v119 = vld [vmem:[#allocation2 + $0x140] sm:$0xff]
    %v120 = vld [vmem:[#allocation2 + $0x148] sm:$0xff]
    %v121 = vld [vmem:[#allocation2 + $0x150] sm:$0xff]
    %v122 = vld [vmem:[#allocation2 + $0x158] sm:$0xff]
    %v123 = vld [vmem:[#allocation2 + $0x160] sm:$0xff]
    %v124 = vld [vmem:[#allocation2 + $0x168] sm:$0xff]
    %v125 = vld [vmem:[#allocation2 + $0x170] sm:$0xff]
    %v126 = vld [vmem:[#allocation2 + $0x178] sm:$0xff]
    %v127 = vld [vmem:[#allocation2 + $0x180] sm:$0xff]
    %v128 = vld [vmem:[#allocation2 + $0x188] sm:$0xff]
    %v129 = vld [vmem:[#allocation2 + $0x190] sm:$0xff]
    %v130 = vld [vmem:[#allocation2 + $0x198] sm:$0xff]
    %v131 = vld [vmem:[#allocation2 + $0x1a0] sm:$0xff]
    %v132 = vld [vmem:[#allocation2 + $0x1a8] sm:$0xff]
    %v133 = vld [vmem:[#allocation2 + $0x1b0] sm:$0xff]
    %v134 = vld [vmem:[#allocation2 + $0x1b8] sm:$0xff]
    %v135 = vld [vmem:[#allocation2 + $0x1c0] sm:$0xff]
    %v136 = vld [vmem:[#allocation2 + $0x1c8] sm:$0xff]
    %v137 = vld [vmem:[#allocation2 + $0x1d0] sm:$0xff]
    %v138 = vld [vmem:[#allocation2 + $0x1d8] sm:$0xff]
    %v139 = vld [vmem:[#allocation2 + $0x1e0] sm:$0xff]
    %v140 = vld [vmem:[#allocation2 + $0x1e8] sm:$0xff]
    %v141 = vld [vmem:[#allocation2 + $0x1f0] sm:$0xff]
    %v142 = vld [vmem:[#allocation2 + $0x1f8] sm:$0xff]
    %v143 = vld [vmem:[#allocation2 + $0x200] sm:$0xff]
    %v144 = vld [vmem:[#allocation2 + $0x208] sm:$0xff]
    %v145 = vld [vmem:[#allocation2 + $0x210] sm:$0xff]
    %v146 = vld [vmem:[#allocation2 + $0x218] sm:$0xff]
    %v147 = vld [vmem:[#allocation2 + $0x220] sm:$0xff]
    %v148 = vld [vmem:[#allocation2 + $0x228] sm:$0xff]
    %v149 = vld [vmem:[#allocation2 + $0x230] sm:$0xff]
    %v150 = vld [vmem:[#allocation2 + $0x238] sm:$0xff]
    %v151 = vld [vmem:[#allocation2 + $0x240] sm:$0xff]
    %v152 = vld [vmem:[#allocation2 + $0x248] sm:$0xff]
    %v153 = vld [vmem:[#allocation2 + $0x250] sm:$0xff]
    %v154 = vld [vmem:[#allocation2 + $0x258] sm:$0xff]
    %v155 = vld [vmem:[#allocation2 + $0x260] sm:$0xff]
    %v156 = vld [vmem:[#allocation2 + $0x268] sm:$0xff]
    %v157 = vld [vmem:[#allocation2 + $0x270] sm:$0xff]
    %v158 = vld [vmem:[#allocation2 + $0x278] sm:$0xff]
    %v159 = vld [vmem:[#allocation2 + $0x280] sm:$0xff]
    %v160 = vld [vmem:[#allocation2 + $0x288] sm:$0xff]
    %v161 = vld [vmem:[#allocation2 + $0x290] sm:$0xff]
    %v162 = vld [vmem:[#allocation2 + $0x298] sm:$0xff]
    %v163 = vld [vmem:[#allocation2 + $0x2a0] sm:$0xff]
    %v164 = vld [vmem:[#allocation2 + $0x2a8] sm:$0xff]
    %v165 = vld [vmem:[#allocation2 + $0x2b0] sm:$0xff]
    %v166 = vld [vmem:[#allocation2 + $0x2b8] sm:$0xff]
    %v167 = vld [vmem:[#allocation2 + $0x2c0] sm:$0xff]
    %v168 = vld [vmem:[#allocation2 + $0x2c8] sm:$0xff]
    %v169 = vld [vmem:[#allocation2 + $0x2d0] sm:$0xff]
    %v170 = vld [vmem:[#allocation2 + $0x2d8] sm:$0xff]
    %v171 = vld [vmem:[#allocation2 + $0x2e0] sm:$0xff]
    %v172 = vld [vmem:[#allocation2 + $0x2e8] sm:$0xff]
    %v173 = vld [vmem:[#allocation2 + $0x2f0] sm:$0xff]
    %v174 = vld [vmem:[#allocation2 + $0x2f8] sm:$0xff]
    %v175 = vld [vmem:[#allocation2 + $0x300] sm:$0xff]
    %v176 = vld [vmem:[#allocation2 + $0x308] sm:$0xff]
    %v177 = vld [vmem:[#allocation2 + $0x310] sm:$0xff]
    %v178 = vld [vmem:[#allocation2 + $0x318] sm:$0xff]
    %v179 = vld [vmem:[#allocation2 + $0x320] sm:$0xff]
    %v180 = vld [vmem:[#allocation2 + $0x328] sm:$0xff]
    %v181 = vld [vmem:[#allocation2 + $0x330] sm:$0xff]
    %v182 = vld [vmem:[#allocation2 + $0x338] sm:$0xff]
    %v183 = vld [vmem:[#allocation2 + $0x340] sm:$0xff]
    %v184 = vld [vmem:[#allocation2 + $0x348] sm:$0xff]
    %v185 = vld [vmem:[#allocation2 + $0x350] sm:$0xff]
    %v186 = vld [vmem:[#allocation2 + $0x358] sm:$0xff]
    %v187 = vld [vmem:[#allocation2 + $0x360] sm:$0xff]
    %v188 = vld [vmem:[#allocation2 + $0x368] sm:$0xff]
    %v189 = vld [vmem:[#allocation2 + $0x370] sm:$0xff]
    %v190 = vld [vmem:[#allocation2 + $0x378] sm:$0xff]
    %v191 = vld [vmem:[#allocation2 + $0x380] sm:$0xff]
    %v192 = vld [vmem:[#allocation2 + $0x388] sm:$0xff]
    %v193 = vld [vmem:[#allocation2 + $0x390] sm:$0xff]
    %v194 = vld [vmem:[#allocation2 + $0x398] sm:$0xff]
    %v195 = vld [vmem:[#allocation2 + $0x3a0] sm:$0xff]
    %v196 = vld [vmem:[#allocation2 + $0x3a8] sm:$0xff]
    %v197 = vld [vmem:[#allocation2 + $0x3b0] sm:$0xff]
    %v198 = vld [vmem:[#allocation2 + $0x3b8] sm:$0xff]
    %v199 = vld [vmem:[#allocation2 + $0x3c0] sm:$0xff]
    %v200 = vld [vmem:[#allocation2 + $0x3c8] sm:$0xff]
    %v201 = vld [vmem:[#allocation2 + $0x3d0] sm:$0xff]
    %v202 = vld [vmem:[#allocation2 + $0x3d8] sm:$0xff]
    %v203 = vld [vmem:[#allocation2 + $0x3e0] sm:$0xff]
    %v204 = vld [vmem:[#allocation2 + $0x3e8] sm:$0xff]
    %v205 = vld [vmem:[#allocation2 + $0x3f0] sm:$0xff]
    %v206 = vld [vmem:[#allocation2 + $0x3f8] sm:$0xff]
    %v207 = vld [vmem:[#allocation2 + $0x400] sm:$0xff]
    %v208 = vld [vmem:[#allocation2 + $0x408] sm:$0xff]
    %v209 = vld [vmem:[#allocation2 + $0x410] sm:$0xff]
    %v210 = vld [vmem:[#allocation2 + $0x418] sm:$0xff]
    %v211 = vld [vmem:[#allocation2 + $0x420] sm:$0xff]
    %v212 = vld [vmem:[#allocation2 + $0x428] sm:$0xff]
    %v213 = vld [vmem:[#allocation2 + $0x430] sm:$0xff]
    %v214 = vld [vmem:[#allocation2 + $0x438] sm:$0xff]
    %v215 = vld [vmem:[#allocation2 + $0x440] sm:$0xff]
    %v216 = vld [vmem:[#allocation2 + $0x448] sm:$0xff]
    %v217 = vld [vmem:[#allocation2 + $0x450] sm:$0xff]
    %v218 = vld [vmem:[#allocation2 + $0x458] sm:$0xff]
    %v219 = vld [vmem:[#allocation2 + $0x460] sm:$0xff]
    %v220 = vld [vmem:[#allocation2 + $0x468] sm:$0xff]
    %v221 = vld [vmem:[#allocation2 + $0x470] sm:$0xff]
    %v222 = vld [vmem:[#allocation2 + $0x478] sm:$0xff]
    %v223 = vld [vmem:[#allocation2 + $0x480] sm:$0xff]
    %v224 = vld [vmem:[#allocation2 + $0x488] sm:$0xff]
    %v225 = vld [vmem:[#allocation2 + $0x490] sm:$0xff]
    %v226 = vld [vmem:[#allocation2 + $0x498] sm:$0xff]
    %v227 = vld [vmem:[#allocation2 + $0x4a0] sm:$0xff]
    %v228 = vld [vmem:[#allocation2 + $0x4a8] sm:$0xff]
    %v229 = vld [vmem:[#allocation2 + $0x4b0] sm:$0xff]
    %v230 = vld [vmem:[#allocation2 + $0x4b8] sm:$0xff]
    %v231 = vld [vmem:[#allocation2 + $0x4c0] sm:$0xff]
    %v232 = vld [vmem:[#allocation2 + $0x4c8] sm:$0xff]
    %v233 = vld [vmem:[#allocation2 + $0x4d0] sm:$0xff]
    %v234 = vld [vmem:[#allocation2 + $0x4d8] sm:$0xff]
    %v235 = vld [vmem:[#allocation2 + $0x4e0] sm:$0xff]
    %v236 = vld [vmem:[#allocation2 + $0x4e8] sm:$0xff]
    %v237 = vld [vmem:[#allocation2 + $0x4f0] sm:$0xff]
    %v238 = vld [vmem:[#allocation2 + $0x4f8] sm:$0xff]
    %v239 = vld [vmem:[#allocation2 + $0x500] sm:$0xff]
    %v240 = vld [vmem:[#allocation2 + $0x508] sm:$0xff]
    %v241 = vld [vmem:[#allocation2 + $0x510] sm:$0xff]
    %v242 = vld [vmem:[#allocation2 + $0x518] sm:$0xff]
    %v243 = vld [vmem:[#allocation2 + $0x520] sm:$0xff]
    %v244 = vld [vmem:[#allocation2 + $0x528] sm:$0xff]
    %v245 = vld [vmem:[#allocation2 + $0x530] sm:$0xff]
    %v246 = vld [vmem:[#allocation2 + $0x538] sm:$0xff]
    %v247 = vld [vmem:[#allocation2 + $0x540] sm:$0xff]
    %v248 = vld [vmem:[#allocation2 + $0x548] sm:$0xff]
    %v249 = vld [vmem:[#allocation2 + $0x550] sm:$0xff]
    %v250 = vld [vmem:[#allocation2 + $0x558] sm:$0xff]
    %v251 = vld [vmem:[#allocation2 + $0x560] sm:$0xff]
    %v252 = vld [vmem:[#allocation2 + $0x568] sm:$0xff]
    %v253 = vld [vmem:[#allocation2 + $0x570] sm:$0xff]
    %v254 = vld [vmem:[#allocation2 + $0x578] sm:$0xff]
    %v255 = vld [vmem:[#allocation2 + $0x580] sm:$0xff]
    %v256 = vld [vmem:[#allocation2 + $0x588] sm:$0xff]
    %v257 = vld [vmem:[#allocation2 + $0x590] sm:$0xff]
    %v258 = vld [vmem:[#allocation2 + $0x598] sm:$0xff]
    %v259 = vld [vmem:[#allocation2 + $0x5a0] sm:$0xff]
    %v260 = vld [vmem:[#allocation2 + $0x5a8] sm:$0xff]
    %v261 = vld [vmem:[#allocation2 + $0x5b0] sm:$0xff]
    %v262 = vld [vmem:[#allocation2 + $0x5b8] sm:$0xff]
    %v263 = vld [vmem:[#allocation2 + $0x5c0] sm:$0xff]
    %v264 = vld [vmem:[#allocation2 + $0x5c8] sm:$0xff]
    %v265 = vld [vmem:[#allocation2 + $0x5d0] sm:$0xff]
    %v266 = vld [vmem:[#allocation2 + $0x5d8] sm:$0xff]
    %v267 = vld [vmem:[#allocation2 + $0x5e0] sm:$0xff]
    %v268 = vld [vmem:[#allocation2 + $0x5e8] sm:$0xff]
    %v269 = vld [vmem:[#allocation2 + $0x5f0] sm:$0xff]
    %v270 = vld [vmem:[#allocation2 + $0x5f8] sm:$0xff]
    %v271 = vld [vmem:[#allocation2 + $0x600] sm:$0xff]
    %v272 = vld [vmem:[#allocation2 + $0x608] sm:$0xff]
    %v273 = vld [vmem:[#allocation2 + $0x610] sm:$0xff]
    %v274 = vld [vmem:[#allocation2 + $0x618] sm:$0xff]
    %v275 = vld [vmem:[#allocation2 + $0x620] sm:$0xff]
    %v276 = vld [vmem:[#allocation2 + $0x628] sm:$0xff]
    %v277 = vld [vmem:[#allocation2 + $0x630] sm:$0xff]
    %v278 = vld [vmem:[#allocation2 + $0x638] sm:$0xff]
    %v279 = vld [vmem:[#allocation2 + $0x640] sm:$0xff]
    %v280 = vld [vmem:[#allocation2 + $0x648] sm:$0xff]
    %v281 = vld [vmem:[#allocation2 + $0x650] sm:$0xff]
    %v282 = vld [vmem:[#allocation2 + $0x658] sm:$0xff]
    %v283 = vld [vmem:[#allocation2 + $0x660] sm:$0xff]
    %v284 = vld [vmem:[#allocation2 + $0x668] sm:$0xff]
    %v285 = vld [vmem:[#allocation2 + $0x670] sm:$0xff]
    %v286 = vld [vmem:[#allocation2 + $0x678] sm:$0xff]
    %v287 = vld [vmem:[#allocation2 + $0x680] sm:$0xff]
    %v288 = vld [vmem:[#allocation2 + $0x688] sm:$0xff]
    %v289 = vld [vmem:[#allocation2 + $0x690] sm:$0xff]
    %v290 = vld [vmem:[#allocation2 + $0x698] sm:$0xff]
    %v291 = vld [vmem:[#allocation2 + $0x6a0] sm:$0xff]
    %v292 = vld [vmem:[#allocation2 + $0x6a8] sm:$0xff]
    %v293 = vld [vmem:[#allocation2 + $0x6b0] sm:$0xff]
    %v294 = vld [vmem:[#allocation2 + $0x6b8] sm:$0xff]
    %v295 = vld [vmem:[#allocation2 + $0x6c0] sm:$0xff]
    %v296 = vld [vmem:[#allocation2 + $0x6c8] sm:$0xff]
    %v297 = vld [vmem:[#allocation2 + $0x6d0] sm:$0xff]
    %v298 = vld [vmem:[#allocation2 + $0x6d8] sm:$0xff]
    %v299 = vld [vmem:[#allocation2 + $0x6e0] sm:$0xff]
    %v300 = vld [vmem:[#allocation2 + $0x6e8] sm:$0xff]
    %v301 = vld [vmem:[#allocation2 + $0x6f0] sm:$0xff]
    %v302 = vld [vmem:[#allocation2 + $0x6f8] sm:$0xff]
    %v303 = vld [vmem:[#allocation2 + $0x700] sm:$0xff]
    %v304 = vld [vmem:[#allocation2 + $0x708] sm:$0xff]
    %v305 = vld [vmem:[#allocation2 + $0x710] sm:$0xff]
    %v306 = vld [vmem:[#allocation2 + $0x718] sm:$0xff]
    %v307 = vld [vmem:[#allocation2 + $0x720] sm:$0xff]
    %v308 = vld [vmem:[#allocation2 + $0x728] sm:$0xff]
    %v309 = vld [vmem:[#allocation2 + $0x730] sm:$0xff]
    %v310 = vld [vmem:[#allocation2 + $0x738] sm:$0xff]
    %v311 = vld [vmem:[#allocation2 + $0x740] sm:$0xff]
    %v312 = vld [vmem:[#allocation2 + $0x748] sm:$0xff]
    %v313 = vld [vmem:[#allocation2 + $0x750] sm:$0xff]
    %v314 = vld [vmem:[#allocation2 + $0x758] sm:$0xff]
    %v315 = vld [vmem:[#allocation2 + $0x760] sm:$0xff]
    %v316 = vld [vmem:[#allocation2 + $0x768] sm:$0xff]
    %v317 = vld [vmem:[#allocation2 + $0x770] sm:$0xff]
    %v318 = vld [vmem:[#allocation2 + $0x778] sm:$0xff]
    %v319 = vld [vmem:[#allocation2 + $0x780] sm:$0xff]
    %v320 = vld [vmem:[#allocation2 + $0x788] sm:$0xff]
    %v321 = vld [vmem:[#allocation2 + $0x790] sm:$0xff]
    %v322 = vld [vmem:[#allocation2 + $0x798] sm:$0xff]
    %v323 = vld [vmem:[#allocation2 + $0x7a0] sm:$0xff]
    %v324 = vld [vmem:[#allocation2 + $0x7a8] sm:$0xff]
    %v325 = vld [vmem:[#allocation2 + $0x7b0] sm:$0xff]
    %v326 = vld [vmem:[#allocation2 + $0x7b8] sm:$0xff]
    %v327 = vld [vmem:[#allocation2 + $0x7c0] sm:$0xff]
    %v328 = vld [vmem:[#allocation2 + $0x7c8] sm:$0xff]
    %v329 = vld [vmem:[#allocation2 + $0x7d0] sm:$0xff]
    %v330 = vld [vmem:[#allocation2 + $0x7d8] sm:$0xff]
    %v331 = vld [vmem:[#allocation2 + $0x7e0] sm:$0xff]
    %v332 = vld [vmem:[#allocation2 + $0x7e8] sm:$0xff]
    %v333 = vld [vmem:[#allocation2 + $0x7f0] sm:$0xff]
    %v334 = vld [vmem:[#allocation2 + $0x7f8] sm:$0xff]
    %v335 = vld [vmem:[#allocation2 + $0x800] sm:$0xff]
    %v336 = vld [vmem:[#allocation2 + $0x808] sm:$0xff]
    %v337 = vld [vmem:[#allocation2 + $0x810] sm:$0xff]
    %v338 = vld [vmem:[#allocation2 + $0x818] sm:$0xff]
    %v339 = vld [vmem:[#allocation2 + $0x820] sm:$0xff]
    %v340 = vld [vmem:[#allocation2 + $0x828] sm:$0xff]
    %v341 = vld [vmem:[#allocation2 + $0x830] sm:$0xff]
    %v342 = vld [vmem:[#allocation2 + $0x838] sm:$0xff]
    %v343 = vld [vmem:[#allocation2 + $0x840] sm:$0xff]
    %v344 = vld [vmem:[#allocation2 + $0x848] sm:$0xff]
    %v345 = vld [vmem:[#allocation2 + $0x850] sm:$0xff]
    %v346 = vld [vmem:[#allocation2 + $0x858] sm:$0xff]
    %v347 = vld [vmem:[#allocation2 + $0x860] sm:$0xff]
    %v348 = vld [vmem:[#allocation2 + $0x868] sm:$0xff]
    %v349 = vld [vmem:[#allocation2 + $0x870] sm:$0xff]
    %v350 = vld [vmem:[#allocation2 + $0x878] sm:$0xff]
    %v351 = vld [vmem:[#allocation2 + $0x880] sm:$0xff]
    %v352 = vld [vmem:[#allocation2 + $0x888] sm:$0xff]
    %v353 = vld [vmem:[#allocation2 + $0x890] sm:$0xff]
    %v354 = vld [vmem:[#allocation2 + $0x898] sm:$0xff]
    %v355 = vld [vmem:[#allocation2 + $0x8a0] sm:$0xff]
    %v356 = vld [vmem:[#allocation2 + $0x8a8] sm:$0xff]
    %v357 = vld [vmem:[#allocation2 + $0x8b0] sm:$0xff]
    %v358 = vld [vmem:[#allocation2 + $0x8b8] sm:$0xff]
    %v359 = vld [vmem:[#allocation2 + $0x8c0] sm:$0xff]
    %v360 = vld [vmem:[#allocation2 + $0x8c8] sm:$0xff]
    %v361 = vld [vmem:[#allocation2 + $0x8d0] sm:$0xff]
    %v362 = vld [vmem:[#allocation2 + $0x8d8] sm:$0xff]
    %v363 = vld [vmem:[#allocation2 + $0x8e0] sm:$0xff]
    %v364 = vld [vmem:[#allocation2 + $0x8e8] sm:$0xff]
    %v365 = vld [vmem:[#allocation2 + $0x8f0] sm:$0xff]
    %v366 = vld [vmem:[#allocation2 + $0x8f8] sm:$0xff]
    %v367 = vld [vmem:[#allocation2 + $0x900] sm:$0xff]
    %v368 = vld [vmem:[#allocation2 + $0x908] sm:$0xff]
    %v369 = vld [vmem:[#allocation2 + $0x910] sm:$0xff]
    %v370 = vld [vmem:[#allocation2 + $0x918] sm:$0xff]
    %v371 = vld [vmem:[#allocation2 + $0x920] sm:$0xff]
    %v372 = vld [vmem:[#allocation2 + $0x928] sm:$0xff]
    %v373 = vld [vmem:[#allocation2 + $0x930] sm:$0xff]
    %v374 = vld [vmem:[#allocation2 + $0x938] sm:$0xff]
    %v375 = vld [vmem:[#allocation2 + $0x940] sm:$0xff]
    %v376 = vld [vmem:[#allocation2 + $0x948] sm:$0xff]
    %v377 = vld [vmem:[#allocation2 + $0x950] sm:$0xff]
    %v378 = vld [vmem:[#allocation2 + $0x958] sm:$0xff]
    %v379 = vld [vmem:[#allocation2 + $0x960] sm:$0xff]
    %v380 = vld [vmem:[#allocation2 + $0x968] sm:$0xff]
    %v381 = vld [vmem:[#allocation2 + $0x970] sm:$0xff]
    %v382 = vld [vmem:[#allocation2 + $0x978] sm:$0xff]
    %v383 = vld [vmem:[#allocation2 + $0x980] sm:$0xff]
    %v384 = vld [vmem:[#allocation2 + $0x988] sm:$0xff]
    %v385 = vld [vmem:[#allocation2 + $0x990] sm:$0xff]
    %v386 = vld [vmem:[#allocation2 + $0x998] sm:$0xff]
    %v387 = vld [vmem:[#allocation2 + $0x9a0] sm:$0xff]
    %v388 = vld [vmem:[#allocation2 + $0x9a8] sm:$0xff]
    %v389 = vld [vmem:[#allocation2 + $0x9b0] sm:$0xff]
    %v390 = vld [vmem:[#allocation2 + $0x9b8] sm:$0xff]
    %v391 = vld [vmem:[#allocation2 + $0x9c0] sm:$0xff]
    %v392 = vld [vmem:[#allocation2 + $0x9c8] sm:$0xff]
    %v393 = vld [vmem:[#allocation2 + $0x9d0] sm:$0xff]
    %v394 = vld [vmem:[#allocation2 + $0x9d8] sm:$0xff]
    %v395 = vld [vmem:[#allocation2 + $0x9e0] sm:$0xff]
    %v396 = vld [vmem:[#allocation2 + $0x9e8] sm:$0xff]
    %v397 = vld [vmem:[#allocation2 + $0x9f0] sm:$0xff]
    %v398 = vld [vmem:[#allocation2 + $0x9f8] sm:$0xff]
    %v399 = vld [vmem:[#allocation2 + $0xa00] sm:$0xff]
    %v400 = vld [vmem:[#allocation2 + $0xa08] sm:$0xff]
    %v401 = vld [vmem:[#allocation2 + $0xa10] sm:$0xff]
    %v402 = vld [vmem:[#allocation2 + $0xa18] sm:$0xff]
    %v403 = vld [vmem:[#allocation2 + $0xa20] sm:$0xff]
    %v404 = vld [vmem:[#allocation2 + $0xa28] sm:$0xff]
    %v405 = vld [vmem:[#allocation2 + $0xa30] sm:$0xff]
    %v406 = vld [vmem:[#allocation2 + $0xa38] sm:$0xff]
    %v407 = vld [vmem:[#allocation2 + $0xa40] sm:$0xff]
    %v408 = vld [vmem:[#allocation2 + $0xa48] sm:$0xff]
    %v409 = vld [vmem:[#allocation2 + $0xa50] sm:$0xff]
    %v410 = vld [vmem:[#allocation2 + $0xa58] sm:$0xff]
    %v411 = vld [vmem:[#allocation2 + $0xa60] sm:$0xff]
    %v412 = vld [vmem:[#allocation2 + $0xa68] sm:$0xff]
    %v413 = vld [vmem:[#allocation2 + $0xa70] sm:$0xff]
    %v414 = vld [vmem:[#allocation2 + $0xa78] sm:$0xff]
    %v415 = vld [vmem:[#allocation2 + $0xa80] sm:$0xff]
    %v416 = vld [vmem:[#allocation2 + $0xa88] sm:$0xff]
    %v417 = vld [vmem:[#allocation2 + $0xa90] sm:$0xff]
    %v418 = vld [vmem:[#allocation2 + $0xa98] sm:$0xff]
    %v419 = vld [vmem:[#allocation2 + $0xaa0] sm:$0xff]
    %v420 = vld [vmem:[#allocation2 + $0xaa8] sm:$0xff]
    %v421 = vld [vmem:[#allocation2 + $0xab0] sm:$0xff]
    %v422 = vld [vmem:[#allocation2 + $0xab8] sm:$0xff]
    %v423 = vld [vmem:[#allocation2 + $0xac0] sm:$0xff]
    %v424 = vld [vmem:[#allocation2 + $0xac8] sm:$0xff]
    %v425 = vld [vmem:[#allocation2 + $0xad0] sm:$0xff]
    %v426 = vld [vmem:[#allocation2 + $0xad8] sm:$0xff]
    %v427 = vld [vmem:[#allocation2 + $0xae0] sm:$0xff]
    %v428 = vld [vmem:[#allocation2 + $0xae8] sm:$0xff]
    %v429 = vld [vmem:[#allocation2 + $0xaf0] sm:$0xff]
    %v430 = vld [vmem:[#allocation2 + $0xaf8] sm:$0xff]
    %v431 = vld [vmem:[#allocation2 + $0xb00] sm:$0xff]
    %v432 = vld [vmem:[#allocation2 + $0xb08] sm:$0xff]
    %v433 = vld [vmem:[#allocation2 + $0xb10] sm:$0xff]
    %v434 = vld [vmem:[#allocation2 + $0xb18] sm:$0xff]
    %v435 = vld [vmem:[#allocation2 + $0xb20] sm:$0xff]
    %v436 = vld [vmem:[#allocation2 + $0xb28] sm:$0xff]
    %v437 = vld [vmem:[#allocation2 + $0xb30] sm:$0xff]
    %v438 = vld [vmem:[#allocation2 + $0xb38] sm:$0xff]
    %v439 = vld [vmem:[#allocation2 + $0xb40] sm:$0xff]
    %v440 = vld [vmem:[#allocation2 + $0xb48] sm:$0xff]
    %v441 = vld [vmem:[#allocation2 + $0xb50] sm:$0xff]
    %v442 = vld [vmem:[#allocation2 + $0xb58] sm:$0xff]
    %v443 = vld [vmem:[#allocation2 + $0xb60] sm:$0xff]
    %v444 = vld [vmem:[#allocation2 + $0xb68] sm:$0xff]
    %v445 = vld [vmem:[#allocation2 + $0xb70] sm:$0xff]
    %v446 = vld [vmem:[#allocation2 + $0xb78] sm:$0xff]
    %v447 = vld [vmem:[#allocation2 + $0xb80] sm:$0xff]
    %v448 = vld [vmem:[#allocation2 + $0xb88] sm:$0xff]
    %v449 = vld [vmem:[#allocation2 + $0xb90] sm:$0xff]
    %v450 = vld [vmem:[#allocation2 + $0xb98] sm:$0xff]
    %v451 = vld [vmem:[#allocation2 + $0xba0] sm:$0xff]
    %v452 = vld [vmem:[#allocation2 + $0xba8] sm:$0xff]
    %v453 = vld [vmem:[#allocation2 + $0xbb0] sm:$0xff]
    %v454 = vld [vmem:[#allocation2 + $0xbb8] sm:$0xff]
    %v455 = vld [vmem:[#allocation2 + $0xbc0] sm:$0xff]
    %v456 = vld [vmem:[#allocation2 + $0xbc8] sm:$0xff]
    %v457 = vld [vmem:[#allocation2 + $0xbd0] sm:$0xff]
    %v458 = vld [vmem:[#allocation2 + $0xbd8] sm:$0xff]
    %v459 = vld [vmem:[#allocation2 + $0xbe0] sm:$0xff]
    %v460 = vld [vmem:[#allocation2 + $0xbe8] sm:$0xff]
    %v461 = vld [vmem:[#allocation2 + $0xbf0] sm:$0xff]
    %v462 = vld [vmem:[#allocation2 + $0xbf8] sm:$0xff]
    %v463 = vld [vmem:[#allocation2 + $0xc00] sm:$0xff]
    %v464 = vld [vmem:[#allocation2 + $0xc08] sm:$0xff]
    %v465 = vld [vmem:[#allocation2 + $0xc10] sm:$0xff]
    %v466 = vld [vmem:[#allocation2 + $0xc18] sm:$0xff]
    %v467 = vld [vmem:[#allocation2 + $0xc20] sm:$0xff]
    %v468 = vld [vmem:[#allocation2 + $0xc28] sm:$0xff]
    %v469 = vld [vmem:[#allocation2 + $0xc30] sm:$0xff]
    %v470 = vld [vmem:[#allocation2 + $0xc38] sm:$0xff]
    %v471 = vld [vmem:[#allocation5] sm:$0xf]
    %v473 = vlaneseq
    %v474 = vshrl.u32 %v473, 7
    %v475 = vsub.s32 0, %v474
    %v476 = vrot.slane %v471, %v475
    %v477 = vlaneseq
    %v478 = vshrl.u32 %v477, 7
    %v479 = vsub.s32 1, %v478
    %v480 = vrot.slane %v471, %v479
    %v481 = vlaneseq
    %v482 = vshrl.u32 %v481, 7
    %v483 = vsub.s32 2, %v482
    %v484 = vrot.slane %v471, %v483
    %v485 = vlaneseq
    %v486 = vshrl.u32 %v485, 7
    %v487 = vsub.s32 3, %v486
    %v488 = vrot.slane %v471, %v487
    %vm493 = vcmask 130048
    %v495 = vsel %vm493, %v78, 0
    %497 = vmatprep.subr.mxu0 %v80
    %498 = vmatpush1.msra.mxu0 %v79
    %499 = vmatprep.subr.mxu0 %v84
    %500 = vmatpush1.msra.mxu0 %v83
    %501 = vmatprep.subr.mxu0 %v88
    %502 = vmatpush1.msra.mxu0 %v87
    %503 = vmatprep.subr.mxu0 %v92
    %504 = vmatpush1.msra.mxu0 %v91
    %505 = vmatprep.subr.mxu0 %v96
    %506 = vmatpush1.msra.mxu0 %v95
    %507 = vmatprep.subr.mxu0 %v100
    %508 = vmatpush1.msra.mxu0 %v99
    %509 = vmatprep.subr.mxu0 %v104
    %510 = vmatpush1.msra.mxu0 %v103
    %511 = vmatprep.subr.mxu0 %v108
    %512 = vmatpush1.msra.mxu0 %v107
    %513 = vmatprep.subr.mxu0 %v112
    %514 = vmatpush1.msra.mxu0 %v111
    %515 = vmatprep.subr.mxu0 %v116
    %516 = vmatpush1.msra.mxu0 %v115
    %517 = vmatprep.subr.mxu0 %v120
    %518 = vmatpush1.msra.mxu0 %v119
    %519 = vmatprep.subr.mxu0 %v124
    %520 = vmatpush1.msra.mxu0 %v123
    %521 = vmatprep.subr.mxu0 %v128
    %522 = vmatpush1.msra.mxu0 %v127
    %523 = vmatprep.subr.mxu0 %v132
    %524 = vmatpush1.msra.mxu0 %v131
    %525 = vmatprep.subr.mxu0 %v136
    %526 = vmatpush1.msra.mxu0 %v135
    %527 = vmatprep.subr.mxu0 %v140
    %528 = vmatpush1.msra.mxu0 %v139
    %529 = vmatprep.subr.mxu0 %v144
    %530 = vmatpush1.msra.mxu0 %v143
    %531 = vmatprep.subr.mxu0 %v148
    %532 = vmatpush1.msra.mxu0 %v147
    %533 = vmatprep.subr.mxu0 %v152
    %534 = vmatpush1.msra.mxu0 %v151
    %535 = vmatprep.subr.mxu0 %v156
    %536 = vmatpush1.msra.mxu0 %v155
    %537 = vmatprep.subr.mxu0 %v160
    %538 = vmatpush1.msra.mxu0 %v159
    %539 = vmatprep.subr.mxu0 %v164
    %540 = vmatpush1.msra.mxu0 %v163
    %541 = vmatprep.subr.mxu0 %v168
    %542 = vmatpush1.msra.mxu0 %v167
    %543 = vmatprep.subr.mxu0 %v172
    %544 = vmatpush1.msra.mxu0 %v171
    %545 = vmatprep.subr.mxu0 %v176
    %546 = vmatpush1.msra.mxu0 %v175
    %547 = vmatprep.subr.mxu0 %v180
    %548 = vmatpush1.msra.mxu0 %v179
    %549 = vmatprep.subr.mxu0 %v184
    %550 = vmatpush1.msra.mxu0 %v183
    %551 = vmatprep.subr.mxu0 %v188
    %552 = vmatpush1.msra.mxu0 %v187
    %553 = vmatprep.subr.mxu0 %v192
    %554 = vmatpush1.msra.mxu0 %v191
    %555 = vmatprep.subr.mxu0 %v196
    %556 = vmatpush1.msra.mxu0 %v195
    %557 = vmatprep.subr.mxu0 %v200
    %558 = vmatpush1.msra.mxu0 %v199
    %559 = vmatprep.subr.mxu0 %v204
    %560 = vmatpush1.msra.mxu0 %v203
    %561 = vmatprep.mubr.f32.mxu0 %v73
    %562 = vmatmul.mubr.f32.gmra.mrb[0].mxu0 %v72
    %v563 = vpop.f32.mrb[0].mxu0
    %v564 = vadd.f32 %v476, %v563
    %v565 = vpop.f32.mrb[0].mxu0
    %v566 = vadd.f32 %v480, %v565
    %567 = vdwg.mxu0
    %568 = vmatprep.subr.mxu0 %v208
    %569 = vmatpush1.msra.mxu0 %v207
    %570 = vmatprep.subr.mxu0 %v212
    %571 = vmatpush1.msra.mxu0 %v211
    %572 = vmatprep.subr.mxu0 %v216
    %573 = vmatpush1.msra.mxu0 %v215
    %574 = vmatprep.subr.mxu0 %v220
    %575 = vmatpush1.msra.mxu0 %v219
    %576 = vmatprep.subr.mxu0 %v224
    %577 = vmatpush1.msra.mxu0 %v223
    %578 = vmatprep.subr.mxu0 %v228
    %579 = vmatpush1.msra.mxu0 %v227
    %580 = vmatprep.subr.mxu0 %v232
    %581 = vmatpush1.msra.mxu0 %v231
    %582 = vmatprep.subr.mxu0 %v236
    %583 = vmatpush1.msra.mxu0 %v235
    %584 = vmatprep.subr.mxu0 %v240
    %585 = vmatpush1.msra.mxu0 %v239
    %586 = vmatprep.subr.mxu0 %v244
    %587 = vmatpush1.msra.mxu0 %v243
    %588 = vmatprep.subr.mxu0 %v248
    %589 = vmatpush1.msra.mxu0 %v247
    %590 = vmatprep.subr.mxu0 %v252
    %591 = vmatpush1.msra.mxu0 %v251
    %592 = vmatprep.subr.mxu0 %v256
    %593 = vmatpush1.msra.mxu0 %v255
    %594 = vmatprep.subr.mxu0 %v260
    %595 = vmatpush1.msra.mxu0 %v259
    %596 = vmatprep.subr.mxu0 %v264
    %597 = vmatpush1.msra.mxu0 %v263
    %598 = vmatprep.subr.mxu0 %v268
    %599 = vmatpush1.msra.mxu0 %v267
    %600 = vmatprep.subr.mxu0 %v272
    %601 = vmatpush1.msra.mxu0 %v271
    %602 = vmatprep.subr.mxu0 %v276
    %603 = vmatpush1.msra.mxu0 %v275
    %604 = vmatprep.subr.mxu0 %v280
    %605 = vmatpush1.msra.mxu0 %v279
    %606 = vmatprep.subr.mxu0 %v284
    %607 = vmatpush1.msra.mxu0 %v283
    %608 = vmatprep.subr.mxu0 %v288
    %609 = vmatpush1.msra.mxu0 %v287
    %610 = vmatprep.subr.mxu0 %v292
    %611 = vmatpush1.msra.mxu0 %v291
    %612 = vmatprep.subr.mxu0 %v296
    %613 = vmatpush1.msra.mxu0 %v295
    %614 = vmatprep.subr.mxu0 %v300
    %615 = vmatpush1.msra.mxu0 %v299
    %616 = vmatprep.subr.mxu0 %v304
    %617 = vmatpush1.msra.mxu0 %v303
    %618 = vmatprep.subr.mxu0 %v308
    %619 = vmatpush1.msra.mxu0 %v307
    %620 = vmatprep.subr.mxu0 %v312
    %621 = vmatpush1.msra.mxu0 %v311
    %622 = vmatprep.subr.mxu0 %v316
    %623 = vmatpush1.msra.mxu0 %v315
    %624 = vmatprep.subr.mxu0 %v320
    %625 = vmatpush1.msra.mxu0 %v319
    %626 = vmatprep.subr.mxu0 %v324
    %627 = vmatpush1.msra.mxu0 %v323
    %628 = vmatprep.subr.mxu0 %v328
    %629 = vmatpush1.msra.mxu0 %v327
    %630 = vmatprep.subr.mxu0 %v332
    %631 = vmatpush1.msra.mxu0 %v331
    %632 = vmatprep.mubr.f32.mxu0 %v75
    %633 = vmatmul.mubr.f32.gmra.mrb[0].mxu0 %v74
    %v634 = vpop.f32.mrb[0].mxu0
    %v635 = vadd.f32 %v564, %v634
    %v636 = vpop.f32.mrb[0].mxu0
    %v637 = vadd.f32 %v566, %v636
    %638 = vdwg.mxu0
    %639 = vmatprep.subr.mxu0 %v336
    %640 = vmatpush1.msra.mxu0 %v335
    %641 = vmatprep.subr.mxu0 %v340
    %642 = vmatpush1.msra.mxu0 %v339
    %643 = vmatprep.subr.mxu0 %v344
    %644 = vmatpush1.msra.mxu0 %v343
    %645 = vmatprep.subr.mxu0 %v348
    %646 = vmatpush1.msra.mxu0 %v347
    %647 = vmatprep.subr.mxu0 %v352
    %648 = vmatpush1.msra.mxu0 %v351
    %649 = vmatprep.subr.mxu0 %v356
    %650 = vmatpush1.msra.mxu0 %v355
    %651 = vmatprep.subr.mxu0 %v360
    %652 = vmatpush1.msra.mxu0 %v359
    %653 = vmatprep.subr.mxu0 %v364
    %654 = vmatpush1.msra.mxu0 %v363
    %655 = vmatprep.subr.mxu0 %v368
    %656 = vmatpush1.msra.mxu0 %v367
    %657 = vmatprep.subr.mxu0 %v372
    %658 = vmatpush1.msra.mxu0 %v371
    %659 = vmatprep.subr.mxu0 %v376
    %660 = vmatpush1.msra.mxu0 %v375
    %661 = vmatprep.subr.mxu0 %v380
    %662 = vmatpush1.msra.mxu0 %v379
    %663 = vmatprep.subr.mxu0 %v384
    %664 = vmatpush1.msra.mxu0 %v383
    %665 = vmatprep.subr.mxu0 %v388
    %666 = vmatpush1.msra.mxu0 %v387
    %667 = vmatprep.subr.mxu0 %v392
    %668 = vmatpush1.msra.mxu0 %v391
    %669 = vmatprep.subr.mxu0 %v396
    %670 = vmatpush1.msra.mxu0 %v395
    %671 = vmatprep.subr.mxu0 %v400
    %672 = vmatpush1.msra.mxu0 %v399
    %673 = vmatprep.subr.mxu0 %v404
    %674 = vmatpush1.msra.mxu0 %v403
    %675 = vmatprep.subr.mxu0 %v408
    %676 = vmatpush1.msra.mxu0 %v407
    %677 = vmatprep.subr.mxu0 %v412
    %678 = vmatpush1.msra.mxu0 %v411
    %679 = vmatprep.subr.mxu0 %v416
    %680 = vmatpush1.msra.mxu0 %v415
    %681 = vmatprep.subr.mxu0 %v420
    %682 = vmatpush1.msra.mxu0 %v419
    %683 = vmatprep.subr.mxu0 %v424
    %684 = vmatpush1.msra.mxu0 %v423
    %685 = vmatprep.subr.mxu0 %v428
    %686 = vmatpush1.msra.mxu0 %v427
    %687 = vmatprep.subr.mxu0 %v432
    %688 = vmatpush1.msra.mxu0 %v431
    %689 = vmatprep.subr.mxu0 %v436
    %690 = vmatpush1.msra.mxu0 %v435
    %691 = vmatprep.subr.mxu0 %v440
    %692 = vmatpush1.msra.mxu0 %v439
    %693 = vmatprep.subr.mxu0 %v444
    %694 = vmatpush1.msra.mxu0 %v443
    %695 = vmatprep.subr.mxu0 %v448
    %696 = vmatpush1.msra.mxu0 %v447
    %697 = vmatprep.subr.mxu0 %v452
    %698 = vmatpush1.msra.mxu0 %v451
    %699 = vmatprep.subr.mxu0 %v456
    %700 = vmatpush1.msra.mxu0 %v455
    %701 = vmatprep.subr.mxu0 %v460
    %702 = vmatpush1.msra.mxu0 %v459
    %703 = vmatprep.mubr.f32.mxu0 %v77
    %704 = vmatmul.mubr.f32.gmra.mrb[0].mxu0 %v76
    %v705 = vpop.f32.mrb[0].mxu0
    %v706 = vadd.f32 %v635, %v705
    %v707 = vpop.f32.mrb[0].mxu0
    %v708 = vadd.f32 %v637, %v707
    %709 = vdwg.mxu0
    %710 = vmatprep.subr.mxu0 %v464
    %711 = vmatpush1.msra.mxu0 %v463
    %712 = vmatprep.subr.mxu0 %v468
    %713 = vmatpush1.msra.mxu0 %v467
    %714 = vmatprep.subr.mxu0 0.0
    %715 = vmatpush1.msra.mxu0 0.0
    %716 = vmatprep.subr.mxu0 0.0
    %717 = vmatpush1.msra.mxu0 0.0
    %718 = vmatprep.subr.mxu0 0.0
    %719 = vmatpush1.msra.mxu0 0.0
    %720 = vmatprep.subr.mxu0 0.0
    %721 = vmatpush1.msra.mxu0 0.0
    %722 = vmatprep.subr.mxu0 0.0
    %723 = vmatpush1.msra.mxu0 0.0
    %724 = vmatprep.subr.mxu0 0.0
    %725 = vmatpush1.msra.mxu0 0.0
    %726 = vmatprep.subr.mxu0 0.0
    %727 = vmatpush1.msra.mxu0 0.0
    %728 = vmatprep.subr.mxu0 0.0
    %729 = vmatpush1.msra.mxu0 0.0
    %730 = vmatprep.subr.mxu0 0.0
    %731 = vmatpush1.msra.mxu0 0.0
    %732 = vmatprep.subr.mxu0 0.0
    %733 = vmatpush1.msra.mxu0 0.0
    %734 = vmatprep.subr.mxu0 0.0
    %735 = vmatpush1.msra.mxu0 0.0
    %736 = vmatprep.subr.mxu0 0.0
    %737 = vmatpush1.msra.mxu0 0.0
    %738 = vmatprep.subr.mxu0 0.0
    %739 = vmatpush1.msra.mxu0 0.0
    %740 = vmatprep.subr.mxu0 0.0
    %741 = vmatpush1.msra.mxu0 0.0
    %742 = vmatprep.subr.mxu0 0.0
    %743 = vmatpush1.msra.mxu0 0.0
    %744 = vmatprep.subr.mxu0 0.0
    %745 = vmatpush1.msra.mxu0 0.0
    %746 = vmatprep.subr.mxu0 0.0
    %747 = vmatpush1.msra.mxu0 0.0
    %748 = vmatprep.subr.mxu0 0.0
    %749 = vmatpush1.msra.mxu0 0.0
    %750 = vmatprep.subr.mxu0 0.0
    %751 = vmatpush1.msra.mxu0 0.0
    %752 = vmatprep.subr.mxu0 0.0
    %753 = vmatpush1.msra.mxu0 0.0
    %754 = vmatprep.subr.mxu0 0.0
    %755 = vmatpush1.msra.mxu0 0.0
    %756 = vmatprep.subr.mxu0 0.0
    %757 = vmatpush1.msra.mxu0 0.0
    %758 = vmatprep.subr.mxu0 0.0
    %759 = vmatpush1.msra.mxu0 0.0
    %760 = vmatprep.subr.mxu0 0.0
    %761 = vmatpush1.msra.mxu0 0.0
    %762 = vmatprep.subr.mxu0 0.0
    %763 = vmatpush1.msra.mxu0 0.0
    %764 = vmatprep.subr.mxu0 0.0
    %765 = vmatpush1.msra.mxu0 0.0
    %766 = vmatprep.subr.mxu0 0.0
    %767 = vmatpush1.msra.mxu0 0.0
    %768 = vmatprep.subr.mxu0 0.0
    %769 = vmatpush1.msra.mxu0 0.0
    %770 = vmatprep.subr.mxu0 0.0
    %771 = vmatpush1.msra.mxu0 0.0
    %772 = vmatprep.subr.mxu0 0.0
    %773 = vmatpush1.msra.mxu0 0.0
    %774 = vmatprep.mubr.f32.mxu0 0.0
    %775 = vmatmul.mubr.f32.gmra.mrb[0].mxu0 %v495
    %v776 = vpop.f32.mrb[0].mxu0
    %v777 = vadd.f32 %v706, %v776
    %v778 = vpop.f32.mrb[0].mxu0
    %v779 = vadd.f32 %v708, %v778
    %780 = vdwg.mxu0
    %781 = vmatprep.subr.mxu0 %v82
    %782 = vmatpush1.msra.mxu0 %v81
    %783 = vmatprep.subr.mxu0 %v86
    %784 = vmatpush1.msra.mxu0 %v85
    %785 = vmatprep.subr.mxu0 %v90
    %786 = vmatpush1.msra.mxu0 %v89
    %787 = vmatprep.subr.mxu0 %v94
    %788 = vmatpush1.msra.mxu0 %v93
    %789 = vmatprep.subr.mxu0 %v98
    %790 = vmatpush1.msra.mxu0 %v97
    %791 = vmatprep.subr.mxu0 %v102
    %792 = vmatpush1.msra.mxu0 %v101
    %793 = vmatprep.subr.mxu0 %v106
    %794 = vmatpush1.msra.mxu0 %v105
    %795 = vmatprep.subr.mxu0 %v110
    %796 = vmatpush1.msra.mxu0 %v109
    %797 = vmatprep.subr.mxu0 %v114
    %798 = vmatpush1.msra.mxu0 %v113
    %799 = vmatprep.subr.mxu0 %v118
    %800 = vmatpush1.msra.mxu0 %v117
    %801 = vmatprep.subr.mxu0 %v122
    %802 = vmatpush1.msra.mxu0 %v121
    %803 = vmatprep.subr.mxu0 %v126
    %804 = vmatpush1.msra.mxu0 %v125
    %805 = vmatprep.subr.mxu0 %v130
    %806 = vmatpush1.msra.mxu0 %v129
    %807 = vmatprep.subr.mxu0 %v134
    %808 = vmatpush1.msra.mxu0 %v133
    %809 = vmatprep.subr.mxu0 %v138
    %810 = vmatpush1.msra.mxu0 %v137
    %811 = vmatprep.subr.mxu0 %v142
    %812 = vmatpush1.msra.mxu0 %v141
    %813 = vmatprep.subr.mxu0 %v146
    %814 = vmatpush1.msra.mxu0 %v145
    %815 = vmatprep.subr.mxu0 %v150
    %816 = vmatpush1.msra.mxu0 %v149
    %817 = vmatprep.subr.mxu0 %v154
    %818 = vmatpush1.msra.mxu0 %v153
    %819 = vmatprep.subr.mxu0 %v158
    %820 = vmatpush1.msra.mxu0 %v157
    %821 = vmatprep.subr.mxu0 %v162
    %822 = vmatpush1.msra.mxu0 %v161
    %823 = vmatprep.subr.mxu0 %v166
    %824 = vmatpush1.msra.mxu0 %v165
    %825 = vmatprep.subr.mxu0 %v170
    %826 = vmatpush1.msra.mxu0 %v169
    %827 = vmatprep.subr.mxu0 %v174
    %828 = vmatpush1.msra.mxu0 %v173
    %829 = vmatprep.subr.mxu0 %v178
    %830 = vmatpush1.msra.mxu0 %v177
    %831 = vmatprep.subr.mxu0 %v182
    %832 = vmatpush1.msra.mxu0 %v181
    %833 = vmatprep.subr.mxu0 %v186
    %834 = vmatpush1.msra.mxu0 %v185
    %835 = vmatprep.subr.mxu0 %v190
    %836 = vmatpush1.msra.mxu0 %v189
    %837 = vmatprep.subr.mxu0 %v194
    %838 = vmatpush1.msra.mxu0 %v193
    %839 = vmatprep.subr.mxu0 %v198
    %840 = vmatpush1.msra.mxu0 %v197
    %841 = vmatprep.subr.mxu0 %v202
    %842 = vmatpush1.msra.mxu0 %v201
    %843 = vmatprep.subr.mxu0 %v206
    %844 = vmatpush1.msra.mxu0 %v205
    %845 = vmatprep.mubr.f32.mxu0 %v73
    %846 = vmatmul.mubr.f32.gmra.mrb[0].mxu0 %v72
    %v847 = vpop.f32.mrb[0].mxu0
    %v848 = vadd.f32 %v484, %v847
    %v849 = vpop.f32.mrb[0].mxu0
    %v850 = vadd.f32 %v488, %v849
    %851 = vdwg.mxu0
    %852 = vmatprep.subr.mxu0 %v210
    %853 = vmatpush1.msra.mxu0 %v209
    %854 = vmatprep.subr.mxu0 %v214
    %855 = vmatpush1.msra.mxu0 %v213
    %856 = vmatprep.subr.mxu0 %v218
    %857 = vmatpush1.msra.mxu0 %v217
    %858 = vmatprep.subr.mxu0 %v222
    %859 = vmatpush1.msra.mxu0 %v221
    %860 = vmatprep.subr.mxu0 %v226
    %861 = vmatpush1.msra.mxu0 %v225
    %862 = vmatprep.subr.mxu0 %v230
    %863 = vmatpush1.msra.mxu0 %v229
    %864 = vmatprep.subr.mxu0 %v234
    %865 = vmatpush1.msra.mxu0 %v233
    %866 = vmatprep.subr.mxu0 %v238
    %867 = vmatpush1.msra.mxu0 %v237
    %868 = vmatprep.subr.mxu0 %v242
    %869 = vmatpush1.msra.mxu0 %v241
    %870 = vmatprep.subr.mxu0 %v246
    %871 = vmatpush1.msra.mxu0 %v245
    %872 = vmatprep.subr.mxu0 %v250
    %873 = vmatpush1.msra.mxu0 %v249
    %874 = vmatprep.subr.mxu0 %v254
    %875 = vmatpush1.msra.mxu0 %v253
    %876 = vmatprep.subr.mxu0 %v258
    %877 = vmatpush1.msra.mxu0 %v257
    %878 = vmatprep.subr.mxu0 %v262
    %879 = vmatpush1.msra.mxu0 %v261
    %880 = vmatprep.subr.mxu0 %v266
    %881 = vmatpush1.msra.mxu0 %v265
    %882 = vmatprep.subr.mxu0 %v270
    %883 = vmatpush1.msra.mxu0 %v269
    %884 = vmatprep.subr.mxu0 %v274
    %885 = vmatpush1.msra.mxu0 %v273
    %886 = vmatprep.subr.mxu0 %v278
    %887 = vmatpush1.msra.mxu0 %v277
    %888 = vmatprep.subr.mxu0 %v282
    %889 = vmatpush1.msra.mxu0 %v281
    %890 = vmatprep.subr.mxu0 %v286
    %891 = vmatpush1.msra.mxu0 %v285
    %892 = vmatprep.subr.mxu0 %v290
    %893 = vmatpush1.msra.mxu0 %v289
    %894 = vmatprep.subr.mxu0 %v294
    %895 = vmatpush1.msra.mxu0 %v293
    %896 = vmatprep.subr.mxu0 %v298
    %897 = vmatpush1.msra.mxu0 %v297
    %898 = vmatprep.subr.mxu0 %v302
    %899 = vmatpush1.msra.mxu0 %v301
    %900 = vmatprep.subr.mxu0 %v306
    %901 = vmatpush1.msra.mxu0 %v305
    %902 = vmatprep.subr.mxu0 %v310
    %903 = vmatpush1.msra.mxu0 %v309
    %904 = vmatprep.subr.mxu0 %v314
    %905 = vmatpush1.msra.mxu0 %v313
    %906 = vmatprep.subr.mxu0 %v318
    %907 = vmatpush1.msra.mxu0 %v317
    %908 = vmatprep.subr.mxu0 %v322
    %909 = vmatpush1.msra.mxu0 %v321
    %910 = vmatprep.subr.mxu0 %v326
    %911 = vmatpush1.msra.mxu0 %v325
    %912 = vmatprep.subr.mxu0 %v330
    %913 = vmatpush1.msra.mxu0 %v329
    %914 = vmatprep.subr.mxu0 %v334
    %915 = vmatpush1.msra.mxu0 %v333
    %916 = vmatprep.mubr.f32.mxu0 %v75
    %917 = vmatmul.mubr.f32.gmra.mrb[0].mxu0 %v74
    %v918 = vpop.f32.mrb[0].mxu0
    %v919 = vadd.f32 %v848, %v918
    %v920 = vpop.f32.mrb[0].mxu0
    %v921 = vadd.f32 %v850, %v920
    %922 = vdwg.mxu0
    %923 = vmatprep.subr.mxu0 %v338
    %924 = vmatpush1.msra.mxu0 %v337
    %925 = vmatprep.subr.mxu0 %v342
    %926 = vmatpush1.msra.mxu0 %v341
    %927 = vmatprep.subr.mxu0 %v346
    %928 = vmatpush1.msra.mxu0 %v345
    %929 = vmatprep.subr.mxu0 %v350
    %930 = vmatpush1.msra.mxu0 %v349
    %931 = vmatprep.subr.mxu0 %v354
    %932 = vmatpush1.msra.mxu0 %v353
    %933 = vmatprep.subr.mxu0 %v358
    %934 = vmatpush1.msra.mxu0 %v357
    %935 = vmatprep.subr.mxu0 %v362
    %936 = vmatpush1.msra.mxu0 %v361
    %937 = vmatprep.subr.mxu0 %v366
    %938 = vmatpush1.msra.mxu0 %v365
    %939 = vmatprep.subr.mxu0 %v370
    %940 = vmatpush1.msra.mxu0 %v369
    %941 = vmatprep.subr.mxu0 %v374
    %942 = vmatpush1.msra.mxu0 %v373
    %943 = vmatprep.subr.mxu0 %v378
    %944 = vmatpush1.msra.mxu0 %v377
    %945 = vmatprep.subr.mxu0 %v382
    %946 = vmatpush1.msra.mxu0 %v381
    %947 = vmatprep.subr.mxu0 %v386
    %948 = vmatpush1.msra.mxu0 %v385
    %949 = vmatprep.subr.mxu0 %v390
    %950 = vmatpush1.msra.mxu0 %v389
    %951 = vmatprep.subr.mxu0 %v394
    %952 = vmatpush1.msra.mxu0 %v393
    %953 = vmatprep.subr.mxu0 %v398
    %954 = vmatpush1.msra.mxu0 %v397
    %955 = vmatprep.subr.mxu0 %v402
    %956 = vmatpush1.msra.mxu0 %v401
    %957 = vmatprep.subr.mxu0 %v406
    %958 = vmatpush1.msra.mxu0 %v405
    %959 = vmatprep.subr.mxu0 %v410
    %960 = vmatpush1.msra.mxu0 %v409
    %961 = vmatprep.subr.mxu0 %v414
    %962 = vmatpush1.msra.mxu0 %v413
    %963 = vmatprep.subr.mxu0 %v418
    %964 = vmatpush1.msra.mxu0 %v417
    %965 = vmatprep.subr.mxu0 %v422
    %966 = vmatpush1.msra.mxu0 %v421
    %967 = vmatprep.subr.mxu0 %v426
    %968 = vmatpush1.msra.mxu0 %v425
    %969 = vmatprep.subr.mxu0 %v430
    %970 = vmatpush1.msra.mxu0 %v429
    %971 = vmatprep.subr.mxu0 %v434
    %972 = vmatpush1.msra.mxu0 %v433
    %973 = vmatprep.subr.mxu0 %v438
    %974 = vmatpush1.msra.mxu0 %v437
    %975 = vmatprep.subr.mxu0 %v442
    %976 = vmatpush1.msra.mxu0 %v441
    %977 = vmatprep.subr.mxu0 %v446
    %978 = vmatpush1.msra.mxu0 %v445
    %979 = vmatprep.subr.mxu0 %v450
    %980 = vmatpush1.msra.mxu0 %v449
    %981 = vmatprep.subr.mxu0 %v454
    %982 = vmatpush1.msra.mxu0 %v453
    %983 = vmatprep.subr.mxu0 %v458
    %984 = vmatpush1.msra.mxu0 %v457
    %985 = vmatprep.subr.mxu0 %v462
    %986 = vmatpush1.msra.mxu0 %v461
    %987 = vmatprep.mubr.f32.mxu0 %v77
    %988 = vmatmul.mubr.f32.gmra.mrb[0].mxu0 %v76
    %v989 = vpop.f32.mrb[0].mxu0
    %v990 = vadd.f32 %v919, %v989
    %v991 = vpop.f32.mrb[0].mxu0
    %v992 = vadd.f32 %v921, %v991
    %993 = vdwg.mxu0
    %994 = vmatprep.subr.mxu0 %v466
    %995 = vmatpush1.msra.mxu0 %v465
    %996 = vmatprep.subr.mxu0 %v470
    %997 = vmatpush1.msra.mxu0 %v469
    %998 = vmatprep.subr.mxu0 0.0
    %999 = vmatpush1.msra.mxu0 0.0
    %1000 = vmatprep.subr.mxu0 0.0
    %1001 = vmatpush1.msra.mxu0 0.0
    %1002 = vmatprep.subr.mxu0 0.0
    %1003 = vmatpush1.msra.mxu0 0.0
    %1004 = vmatprep.subr.mxu0 0.0
    %1005 = vmatpush1.msra.mxu0 0.0
    %1006 = vmatprep.subr.mxu0 0.0
    %1007 = vmatpush1.msra.mxu0 0.0
    %1008 = vmatprep.subr.mxu0 0.0
    %1009 = vmatpush1.msra.mxu0 0.0
    %1010 = vmatprep.subr.mxu0 0.0
    %1011 = vmatpush1.msra.mxu0 0.0
    %1012 = vmatprep.subr.mxu0 0.0
    %1013 = vmatpush1.msra.mxu0 0.0
    %1014 = vmatprep.subr.mxu0 0.0
    %1015 = vmatpush1.msra.mxu0 0.0
    %1016 = vmatprep.subr.mxu0 0.0
    %1017 = vmatpush1.msra.mxu0 0.0
    %1018 = vmatprep.subr.mxu0 0.0
    %1019 = vmatpush1.msra.mxu0 0.0
    %1020 = vmatprep.subr.mxu0 0.0
    %1021 = vmatpush1.msra.mxu0 0.0
    %1022 = vmatprep.subr.mxu0 0.0
    %1023 = vmatpush1.msra.mxu0 0.0
    %1024 = vmatprep.subr.mxu0 0.0
    %1025 = vmatpush1.msra.mxu0 0.0
    %1026 = vmatprep.subr.mxu0 0.0
    %1027 = vmatpush1.msra.mxu0 0.0
    %1028 = vmatprep.subr.mxu0 0.0
    %1029 = vmatpush1.msra.mxu0 0.0
    %1030 = vmatprep.subr.mxu0 0.0
    %1031 = vmatpush1.msra.mxu0 0.0
    %1032 = vmatprep.subr.mxu0 0.0
    %1033 = vmatpush1.msra.mxu0 0.0
    %1034 = vmatprep.subr.mxu0 0.0
    %1035 = vmatpush1.msra.mxu0 0.0
    %1036 = vmatprep.subr.mxu0 0.0
    %1037 = vmatpush1.msra.mxu0 0.0
    %1038 = vmatprep.subr.mxu0 0.0
    %1039 = vmatpush1.msra.mxu0 0.0
    %1040 = vmatprep.subr.mxu0 0.0
    %1041 = vmatpush1.msra.mxu0 0.0
    %1042 = vmatprep.subr.mxu0 0.0
    %1043 = vmatpush1.msra.mxu0 0.0
    %1044 = vmatprep.subr.mxu0 0.0
    %1045 = vmatpush1.msra.mxu0 0.0
    %1046 = vmatprep.subr.mxu0 0.0
    %1047 = vmatpush1.msra.mxu0 0.0
    %1048 = vmatprep.subr.mxu0 0.0
    %1049 = vmatpush1.msra.mxu0 0.0
    %1050 = vmatprep.subr.mxu0 0.0
    %1051 = vmatpush1.msra.mxu0 0.0
    %1052 = vmatprep.subr.mxu0 0.0
    %1053 = vmatpush1.msra.mxu0 0.0
    %1054 = vmatprep.subr.mxu0 0.0
    %1055 = vmatpush1.msra.mxu0 0.0
    %1056 = vmatprep.subr.mxu0 0.0
    %1057 = vmatpush1.msra.mxu0 0.0
    %1058 = vmatprep.mubr.f32.mxu0 0.0
    %1059 = vmatmul.mubr.f32.gmra.mrb[0].mxu0 %v495
    %v1060 = vpop.f32.mrb[0].mxu0
    %v1061 = vadd.f32 %v990, %v1060
    %v1062 = vpop.f32.mrb[0].mxu0
    %v1063 = vadd.f32 %v992, %v1062
    %1064 = vdwg.mxu0
    %v1065 = vmax.f32 %v777, 0.0
    %v1066 = vmax.f32 %v779, 0.0
    %v1067 = vmax.f32 %v1061, 0.0
    %v1068 = vmax.f32 %v1063, 0.0
    %v1069 = vld [vmem:[#allocation7] sm:$0xff]
    %v1070 = vld [vmem:[#allocation7 + $0x8] sm:$0xff]
    %v1071 = vld [vmem:[#allocation7 + $0x10] sm:$0xff]
    %v1072 = vld [vmem:[#allocation7 + $0x18] sm:$0xff]
    %v1073 = vld [vmem:[#allocation7 + $0x20] sm:$0xff]
    %v1074 = vld [vmem:[#allocation7 + $0x28] sm:$0xff]
    %v1075 = vld [vmem:[#allocation7 + $0x30] sm:$0xff]
    %v1076 = vld [vmem:[#allocation7 + $0x38] sm:$0xff]
    %v1077 = vld [vmem:[#allocation7 + $0x40] sm:$0xff]
    %v1078 = vld [vmem:[#allocation7 + $0x48] sm:$0xff]
    %v1079 = vld [vmem:[#allocation7 + $0x50] sm:$0xff]
    %v1080 = vld [vmem:[#allocation7 + $0x58] sm:$0xff]
    %v1081 = vld [vmem:[#allocation7 + $0x60] sm:$0xff]
    %v1082 = vld [vmem:[#allocation7 + $0x68] sm:$0xff]
    %v1083 = vld [vmem:[#allocation7 + $0x70] sm:$0xff]
    %v1084 = vld [vmem:[#allocation7 + $0x78] sm:$0xff]
    %v1085 = vld [vmem:[#allocation7 + $0x80] sm:$0xff]
    %v1086 = vld [vmem:[#allocation7 + $0x88] sm:$0xff]
    %v1087 = vld [vmem:[#allocation7 + $0x90] sm:$0xff]
    %v1088 = vld [vmem:[#allocation7 + $0x98] sm:$0xff]
    %v1089 = vld [vmem:[#allocation7 + $0xa0] sm:$0xff]
    %v1090 = vld [vmem:[#allocation7 + $0xa8] sm:$0xff]
    %v1091 = vld [vmem:[#allocation7 + $0xb0] sm:$0xff]
    %v1092 = vld [vmem:[#allocation7 + $0xb8] sm:$0xff]
    %v1093 = vld [vmem:[#allocation7 + $0xc0] sm:$0xff]
    %v1094 = vld [vmem:[#allocation7 + $0xc8] sm:$0xff]
    %v1095 = vld [vmem:[#allocation7 + $0xd0] sm:$0xff]
    %v1096 = vld [vmem:[#allocation7 + $0xd8] sm:$0xff]
    %v1097 = vld [vmem:[#allocation7 + $0xe0] sm:$0xff]
    %v1098 = vld [vmem:[#allocation7 + $0xe8] sm:$0xff]
    %v1099 = vld [vmem:[#allocation7 + $0xf0] sm:$0xff]
    %v1100 = vld [vmem:[#allocation7 + $0xf8] sm:$0xff]
    %v1101 = vld [vmem:[#allocation7 + $0x100] sm:$0xff]
    %v1102 = vld [vmem:[#allocation7 + $0x108] sm:$0xff]
    %v1103 = vld [vmem:[#allocation7 + $0x110] sm:$0xff]
    %v1104 = vld [vmem:[#allocation7 + $0x118] sm:$0xff]
    %v1105 = vld [vmem:[#allocation7 + $0x120] sm:$0xff]
    %v1106 = vld [vmem:[#allocation7 + $0x128] sm:$0xff]
    %v1107 = vld [vmem:[#allocation7 + $0x130] sm:$0xff]
    %v1108 = vld [vmem:[#allocation7 + $0x138] sm:$0xff]
    %v1109 = vld [vmem:[#allocation7 + $0x140] sm:$0xff]
    %v1110 = vld [vmem:[#allocation7 + $0x148] sm:$0xff]
    %v1111 = vld [vmem:[#allocation7 + $0x150] sm:$0xff]
    %v1112 = vld [vmem:[#allocation7 + $0x158] sm:$0xff]
    %v1113 = vld [vmem:[#allocation7 + $0x160] sm:$0xff]
    %v1114 = vld [vmem:[#allocation7 + $0x168] sm:$0xff]
    %v1115 = vld [vmem:[#allocation7 + $0x170] sm:$0xff]
    %v1116 = vld [vmem:[#allocation7 + $0x178] sm:$0xff]
    %v1117 = vld [vmem:[#allocation7 + $0x180] sm:$0xff]
    %v1118 = vld [vmem:[#allocation7 + $0x188] sm:$0xff]
    %v1119 = vld [vmem:[#allocation7 + $0x190] sm:$0xff]
    %v1120 = vld [vmem:[#allocation7 + $0x198] sm:$0xff]
    %v1121 = vld [vmem:[#allocation7 + $0x1a0] sm:$0xff]
    %v1122 = vld [vmem:[#allocation7 + $0x1a8] sm:$0xff]
    %v1123 = vld [vmem:[#allocation7 + $0x1b0] sm:$0xff]
    %v1124 = vld [vmem:[#allocation7 + $0x1b8] sm:$0xff]
    %v1125 = vld [vmem:[#allocation7 + $0x1c0] sm:$0xff]
    %v1126 = vld [vmem:[#allocation7 + $0x1c8] sm:$0xff]
    %v1127 = vld [vmem:[#allocation7 + $0x1d0] sm:$0xff]
    %v1128 = vld [vmem:[#allocation7 + $0x1d8] sm:$0xff]
    %v1129 = vld [vmem:[#allocation7 + $0x1e0] sm:$0xff]
    %v1130 = vld [vmem:[#allocation7 + $0x1e8] sm:$0xff]
    %v1131 = vld [vmem:[#allocation7 + $0x1f0] sm:$0xff]
    %v1132 = vld [vmem:[#allocation7 + $0x1f8] sm:$0xff]
    %v1133 = vld [vmem:[#allocation8] sm:$0x1]
    %v1135 = vlaneseq
    %v1136 = vshrl.u32 %v1135, 7
    %v1137 = vsub.s32 0, %v1136
    %v1138 = vrot.slane %v1133, %v1137
    %1140 = vmatprep.subr.mxu0 0.0
    %1141 = vmatpush1.msra.mxu0 %v1069
    %1142 = vmatprep.subr.mxu0 0.0
    %1143 = vmatpush1.msra.mxu0 %v1070
    %1144 = vmatprep.subr.mxu0 0.0
    %1145 = vmatpush1.msra.mxu0 %v1071
    %1146 = vmatprep.subr.mxu0 0.0
    %1147 = vmatpush1.msra.mxu0 %v1072
    %1148 = vmatprep.subr.mxu0 0.0
    %1149 = vmatpush1.msra.mxu0 %v1073
    %1150 = vmatprep.subr.mxu0 0.0
    %1151 = vmatpush1.msra.mxu0 %v1074
    %1152 = vmatprep.subr.mxu0 0.0
    %1153 = vmatpush1.msra.mxu0 %v1075
    %1154 = vmatprep.subr.mxu0 0.0
    %1155 = vmatpush1.msra.mxu0 %v1076
    %1156 = vmatprep.subr.mxu0 0.0
    %1157 = vmatpush1.msra.mxu0 %v1077
    %1158 = vmatprep.subr.mxu0 0.0
    %1159 = vmatpush1.msra.mxu0 %v1078
    %1160 = vmatprep.subr.mxu0 0.0
    %1161 = vmatpush1.msra.mxu0 %v1079
    %1162 = vmatprep.subr.mxu0 0.0
    %1163 = vmatpush1.msra.mxu0 %v1080
    %1164 = vmatprep.subr.mxu0 0.0
    %1165 = vmatpush1.msra.mxu0 %v1081
    %1166 = vmatprep.subr.mxu0 0.0
    %1167 = vmatpush1.msra.mxu0 %v1082
    %1168 = vmatprep.subr.mxu0 0.0
    %1169 = vmatpush1.msra.mxu0 %v1083
    %1170 = vmatprep.subr.mxu0 0.0
    %1171 = vmatpush1.msra.mxu0 %v1084
    %1172 = vmatprep.subr.mxu0 0.0
    %1173 = vmatpush1.msra.mxu0 %v1085
    %1174 = vmatprep.subr.mxu0 0.0
    %1175 = vmatpush1.msra.mxu0 %v1086
    %1176 = vmatprep.subr.mxu0 0.0
    %1177 = vmatpush1.msra.mxu0 %v1087
    %1178 = vmatprep.subr.mxu0 0.0
    %1179 = vmatpush1.msra.mxu0 %v1088
    %1180 = vmatprep.subr.mxu0 0.0
    %1181 = vmatpush1.msra.mxu0 %v1089
    %1182 = vmatprep.subr.mxu0 0.0
    %1183 = vmatpush1.msra.mxu0 %v1090
    %1184 = vmatprep.subr.mxu0 0.0
    %1185 = vmatpush1.msra.mxu0 %v1091
    %1186 = vmatprep.subr.mxu0 0.0
    %1187 = vmatpush1.msra.mxu0 %v1092
    %1188 = vmatprep.subr.mxu0 0.0
    %1189 = vmatpush1.msra.mxu0 %v1093
    %1190 = vmatprep.subr.mxu0 0.0
    %1191 = vmatpush1.msra.mxu0 %v1094
    %1192 = vmatprep.subr.mxu0 0.0
    %1193 = vmatpush1.msra.mxu0 %v1095
    %1194 = vmatprep.subr.mxu0 0.0
    %1195 = vmatpush1.msra.mxu0 %v1096
    %1196 = vmatprep.subr.mxu0 0.0
    %1197 = vmatpush1.msra.mxu0 %v1097
    %1198 = vmatprep.subr.mxu0 0.0
    %1199 = vmatpush1.msra.mxu0 %v1098
    %1200 = vmatprep.subr.mxu0 0.0
    %1201 = vmatpush1.msra.mxu0 %v1099
    %1202 = vmatprep.subr.mxu0 0.0
    %1203 = vmatpush1.msra.mxu0 %v1100
    %1204 = vmatprep.mubr.f32.mxu0 %v1066
    %1205 = vmatmul.mubr.f32.gmra.mrb[0].mxu0 %v1065
    %v1206 = vpop.f32.mrb[0].mxu0
    %v1207 = vadd.f32 %v1138, %v1206
    %v1208 = vpop.f32.mrb[0].mxu0
    %1209 = vdwg.mxu0
    %1210 = vmatprep.subr.mxu0 0.0
    %1211 = vmatpush1.msra.mxu0 %v1101
    %1212 = vmatprep.subr.mxu0 0.0
    %1213 = vmatpush1.msra.mxu0 %v1102
    %1214 = vmatprep.subr.mxu0 0.0
    %1215 = vmatpush1.msra.mxu0 %v1103
    %1216 = vmatprep.subr.mxu0 0.0
    %1217 = vmatpush1.msra.mxu0 %v1104
    %1218 = vmatprep.subr.mxu0 0.0
    %1219 = vmatpush1.msra.mxu0 %v1105
    %1220 = vmatprep.subr.mxu0 0.0
    %1221 = vmatpush1.msra.mxu0 %v1106
    %1222 = vmatprep.subr.mxu0 0.0
    %1223 = vmatpush1.msra.mxu0 %v1107
    %1224 = vmatprep.subr.mxu0 0.0
    %1225 = vmatpush1.msra.mxu0 %v1108
    %1226 = vmatprep.subr.mxu0 0.0
    %1227 = vmatpush1.msra.mxu0 %v1109
    %1228 = vmatprep.subr.mxu0 0.0
    %1229 = vmatpush1.msra.mxu0 %v1110
    %1230 = vmatprep.subr.mxu0 0.0
    %1231 = vmatpush1.msra.mxu0 %v1111
    %1232 = vmatprep.subr.mxu0 0.0
    %1233 = vmatpush1.msra.mxu0 %v1112
    %1234 = vmatprep.subr.mxu0 0.0
    %1235 = vmatpush1.msra.mxu0 %v1113
    %1236 = vmatprep.subr.mxu0 0.0
    %1237 = vmatpush1.msra.mxu0 %v1114
    %1238 = vmatprep.subr.mxu0 0.0
    %1239 = vmatpush1.msra.mxu0 %v1115
    %1240 = vmatprep.subr.mxu0 0.0
    %1241 = vmatpush1.msra.mxu0 %v1116
    %1242 = vmatprep.subr.mxu0 0.0
    %1243 = vmatpush1.msra.mxu0 %v1117
    %1244 = vmatprep.subr.mxu0 0.0
    %1245 = vmatpush1.msra.mxu0 %v1118
    %1246 = vmatprep.subr.mxu0 0.0
    %1247 = vmatpush1.msra.mxu0 %v1119
    %1248 = vmatprep.subr.mxu0 0.0
    %1249 = vmatpush1.msra.mxu0 %v1120
    %1250 = vmatprep.subr.mxu0 0.0
    %1251 = vmatpush1.msra.mxu0 %v1121
    %1252 = vmatprep.subr.mxu0 0.0
    %1253 = vmatpush1.msra.mxu0 %v1122
    %1254 = vmatprep.subr.mxu0 0.0
    %1255 = vmatpush1.msra.mxu0 %v1123
    %1256 = vmatprep.subr.mxu0 0.0
    %1257 = vmatpush1.msra.mxu0 %v1124
    %1258 = vmatprep.subr.mxu0 0.0
    %1259 = vmatpush1.msra.mxu0 %v1125
    %1260 = vmatprep.subr.mxu0 0.0
    %1261 = vmatpush1.msra.mxu0 %v1126
    %1262 = vmatprep.subr.mxu0 0.0
    %1263 = vmatpush1.msra.mxu0 %v1127
    %1264 = vmatprep.subr.mxu0 0.0
    %1265 = vmatpush1.msra.mxu0 %v1128
    %1266 = vmatprep.subr.mxu0 0.0
    %1267 = vmatpush1.msra.mxu0 %v1129
    %1268 = vmatprep.subr.mxu0 0.0
    %1269 = vmatpush1.msra.mxu0 %v1130
    %1270 = vmatprep.subr.mxu0 0.0
    %1271 = vmatpush1.msra.mxu0 %v1131
    %1272 = vmatprep.subr.mxu0 0.0
    %1273 = vmatpush1.msra.mxu0 %v1132
    %1274 = vmatprep.mubr.f32.mxu0 %v1068
    %1275 = vmatmul.mubr.f32.gmra.mrb[0].mxu0 %v1067
    %v1276 = vpop.f32.mrb[0].mxu0
    %v1277 = vadd.f32 %v1207, %v1276
    %v1278 = vpop.f32.mrb[0].mxu0
    %1279 = vdwg.mxu0
    %1280 = vst [vmem:[#allocation10] sm:$0xff] %v1277
    // Predicated region
    $region38: #{net_forward.1} parent=1 // pred_check
      _
    $region39: #{net_forward.1} parent=1 // pred_check_branch
      %1282 = sbr.rel (0) target = $region41
    $region40: #{net_forward.1} parent=1 // pred_region
      %s1284 = ssub.s32 128, 128
      %1285 = vsyncadd [#allocation4], %s1284
      %s1287 = sshll.u32 [#allocation10], 4
      %s1288 = int_to_ptr.vmem [resolvable:$true] %s1287
      %1290 = dma.vmem_to_hbm [thread:$0]  %s1288, 128, %s5, [#allocation4]
    $region41: #{net_forward.1} parent=1 // pred_fallthru
      _
    // Predicated region
    $region42: #{net_forward.1} parent=1 // pred_check
      _
    $region43: #{net_forward.1} parent=1 // pred_check_branch
      %1292 = sbr.rel (0) target = $region45
    $region44: #{net_forward.1} parent=1 // pred_region
      %1293 = dma.done [#allocation4], 128
    $region45: #{net_forward.1} parent=1 // pred_fallthru
      _
    %1294 = vsyncpa [#allocation3], 1
    %1295 = vsyncpa [#allocation6], 1
    %1296 = vsyncpa [#allocation9], 1
    %1297 = vsyncpa [#allocation4], 1

</llo_original>
